<compile_context>
chip_gen: v5e
topology: v5e:2x2
jax: 0.10.0
libtpu: 0.0.40
codegen_flags: <defaults>
</compile_context>

<pallas_src>
import functools

import jax
import jax.numpy as jnp
import numpy as np
from jax.experimental import pallas as pl
from jax.experimental.pallas import tpu as pltpu

# "config" values (synthetic, deterministic)
LSTM_HIDDEN_SIZE = 32
LSTM_LAYER_NUM = 2
INPUT_SIZE = 5


def _sigmoid(x):
    # Exact identity sigmoid(x) = 0.5*(tanh(x/2)+1); tanh lowers to the EUP slot
    # (otherwise idle here), avoiding a VALU divide on the critical path.
    return 0.5 * (jnp.tanh(0.5 * x) + 1.0)


def meta_optimizer_kernel(
    x_ref, h0_ref, c0_ref,
    wih0_ref, whh0_ref, b0_ref,
    wih1_ref, whh1_ref, b1_ref,
    wlin_ref, blin_ref,
    lr_ref, hout_ref, cout_ref,
    *, hidden,
):
    H = hidden
    x = x_ref[...].astype(jnp.float32)                     # (5, TB)

    layer_params = (
        (wih0_ref, whh0_ref, b0_ref),
        (wih1_ref, whh1_ref, b1_ref),
    )

    for l, (wih_ref, whh_ref, b_ref) in enumerate(layer_params):
        h = h0_ref[l]                                      # (H, TB)
        c = c0_ref[l]                                      # (H, TB)
        # gates = W_ih @ x + W_hh @ h + (b_ih + b_hh); PyTorch gate order [i, f, g, o]
        # -> (4H, TB): batch on lanes, gates stacked along sublanes.
        gates = (
            jnp.dot(wih_ref[...], x, preferred_element_type=jnp.float32)
            + jnp.dot(whh_ref[...], h, preferred_element_type=jnp.float32)
            + b_ref[...]                                   # (4H, 1) broadcast over lanes
        )
        # Sublane slices at 32-row (8-aligned) boundaries: whole-vreg views, no lane shuffles.
        i = _sigmoid(gates[0 * H:1 * H, :])
        f = _sigmoid(gates[1 * H:2 * H, :])
        g = jnp.tanh(gates[2 * H:3 * H, :])
        o = _sigmoid(gates[3 * H:4 * H, :])
        c_new = f * c + i * g
        h_new = o * jnp.tanh(c_new)
        hout_ref[l] = h_new                                # lane-dense unmasked store
        cout_ref[l] = c_new
        x = h_new                                          # feed next layer

    # Final Linear(H, 1) + sigmoid as VPU multiply + sublane reduce (MXU not needed
    # for a 1-column output): logit row is (1, TB), lane-dense.
    logit = jnp.sum(wlin_ref[...] * x, axis=0, keepdims=True) + blin_ref[0, 0]
    lr_ref[...] = _sigmoid(logit)


def meta_optimizer_forward(x, h0_t, c0_t, params, *, block_batch=512):
    """MetaOptimizer.forward.

    Args:
      x:    (N, 5)     inputs = cat(lr, preprocessed-grad(2), param, loss)
      h0_t: (L, H, N)  LSTM hidden state (batch-on-lanes layout)
      c0_t: (L, H, N)  LSTM cell state   (batch-on-lanes layout)
    Returns (lr (N,1), h_new (L,H,N), c_new (L,H,N)).
    """
    N = x.shape[0]
    L, H, _ = h0_t.shape
    assert L == LSTM_LAYER_NUM and H == LSTM_HIDDEN_SIZE

    # Batch tile: multiple of 128 lanes, capped at block_batch, padded if needed.
    TB = max(128, min(int(block_batch), pl.cdiv(N, 128) * 128))
    assert TB % 128 == 0
    Np = pl.cdiv(N, TB) * TB

    (wih0, whh0, b0, wih1, whh1, b1, wlin, blin) = params

    x_t = x.T                                              # (5, N): batch on lanes
    if Np != N:
        pad = Np - N
        x_t = jnp.pad(x_t, ((0, 0), (0, pad)))
        h0_t = jnp.pad(h0_t, ((0, 0), (0, 0), (0, pad)))
        c0_t = jnp.pad(c0_t, ((0, 0), (0, 0), (0, pad)))

    grid = (Np // TB,)
    full = lambda i: (0, 0)

    # Per-step VMEM estimate (double-buffered batch-tiled ins/outs), f32 bytes.
    per_step = 4 * (INPUT_SIZE * TB + 4 * L * H * TB + TB)
    vmem_est = 2 * per_step
    vmem_limit = None
    if vmem_est > 12 * 1024 * 1024:   # exceeds v5e's 16 MiB scoped default (w/ margin)
        vmem_limit = min(2 * vmem_est, 100 * 1024 * 1024)

    kernel = functools.partial(meta_optimizer_kernel, hidden=H)

    lr_row, h_new, c_new = pl.pallas_call(
        kernel,
        out_shape=(
            jax.ShapeDtypeStruct((1, Np), jnp.float32),    # lr as a lane-dense row
            jax.ShapeDtypeStruct((L, H, Np), jnp.float32),
            jax.ShapeDtypeStruct((L, H, Np), jnp.float32),
        ),
        grid_spec=pltpu.PrefetchScalarGridSpec(
            num_scalar_prefetch=0,
            grid=grid,
            in_specs=[
                pl.BlockSpec((INPUT_SIZE, TB), lambda i: (0, i)),       # x (5, TB)
                pl.BlockSpec((L, H, TB), lambda i: (0, 0, i)),          # h0
                pl.BlockSpec((L, H, TB), lambda i: (0, 0, i)),          # c0
                pl.BlockSpec((4 * H, INPUT_SIZE), full),                # W_ih layer0
                pl.BlockSpec((4 * H, H), full),                         # W_hh layer0
                pl.BlockSpec((4 * H, 1), full),                         # b_ih+b_hh layer0
                pl.BlockSpec((4 * H, H), full),                         # W_ih layer1
                pl.BlockSpec((4 * H, H), full),                         # W_hh layer1
                pl.BlockSpec((4 * H, 1), full),                         # b_ih+b_hh layer1
                pl.BlockSpec((H, 1), full),                             # linear W (H,1)
                pl.BlockSpec(memory_space=pltpu.MemorySpace.SMEM),      # linear bias (1,1)
            ],
            out_specs=[
                pl.BlockSpec((1, TB), lambda i: (0, i)),                # lr row
                pl.BlockSpec((L, H, TB), lambda i: (0, 0, i)),          # h_new
                pl.BlockSpec((L, H, TB), lambda i: (0, 0, i)),          # c_new
            ],
        ),
        compiler_params=pltpu.CompilerParams(
            dimension_semantics=("parallel",),
            vmem_limit_bytes=vmem_limit,
        ),
    )(x_t, h0_t, c0_t, wih0, whh0, b0, wih1, whh1, b1, wlin, blin)

    if Np != N:
        lr_row = lr_row[:, :N]
        h_new = h_new[:, :, :N]
        c_new = c_new[:, :, :N]
    lr = lr_row.reshape(N, 1)
    return lr, h_new, c_new


def meta_optimizer_reference(x, h0, c0, params):
    """Pure-JAX reference (same math as PyTorch LSTM + Linear + sigmoid, seq_len=1).

    x: (N, 5); h0/c0: (L, N, H) in the PyTorch convention.
    """
    (wih0, whh0, b0, wih1, whh1, b1, wlin, blin) = params
    H = LSTM_HIDDEN_SIZE
    h_out, c_out = [], []
    inp = x
    for l, (wih, whh, b) in enumerate(((wih0, whh0, b0), (wih1, whh1, b1))):
        h, c = h0[l], c0[l]
        gates = inp @ wih.T + h @ whh.T + b[:, 0][None, :]
        i = jax.nn.sigmoid(gates[:, 0 * H:1 * H])
        f = jax.nn.sigmoid(gates[:, 1 * H:2 * H])
        g = jnp.tanh(gates[:, 2 * H:3 * H])
        o = jax.nn.sigmoid(gates[:, 3 * H:4 * H])
        c_new = f * c + i * g
        h_new = o * jnp.tanh(c_new)
        h_out.append(h_new)
        c_out.append(c_new)
        inp = h_new
    lr = jax.nn.sigmoid(inp @ wlin + blin[0, 0])
    return lr, jnp.stack(h_out), jnp.stack(c_out)


def init_params(key, hidden=LSTM_HIDDEN_SIZE):
    """Deterministic synthetic init matching PyTorch LSTM/Linear shapes.

    PyTorch shapes: W_ih_l0 (4H,5), W_hh_l0 (4H,H), W_ih_l1 (4H,H), W_hh_l1 (4H,H),
    biases (4H,), linear.weight (1,H), linear.bias (1,) with bias[0] = -10.
    Weights stay in native (4H, in) orientation (kernel computes W @ x);
    b_ih + b_hh are folded into one (4H,1) column; linear weight stored as (H,1).
    """
    H = hidden
    ks = jax.random.split(key, 10)
    bound = 1.0 / np.sqrt(H)
    u = lambda k, shape: jax.random.uniform(k, shape, jnp.float32, -bound, bound)

    wih0 = u(ks[0], (4 * H, INPUT_SIZE))
    whh0 = u(ks[1], (4 * H, H))
    b0 = (u(ks[2], (4 * H,)) + u(ks[3], (4 * H,)))[:, None]
    wih1 = u(ks[4], (4 * H, H))
    whh1 = u(ks[5], (4 * H, H))
    b1 = (u(ks[6], (4 * H,)) + u(ks[7], (4 * H,)))[:, None]
    wlin = u(ks[8], (1, H)).T                              # -> (H, 1)
    blin = jnp.full((1, 1), -10.0, dtype=jnp.float32)      # linear.bias.data[0] = -10
    return (wih0, whh0, b0, wih1, whh1, b1, wlin, blin)


if __name__ == "__main__":
    key = jax.random.PRNGKey(0)
    k_x, k_p = jax.random.split(key)

    N = 256                      # number of flat parameters being meta-updated (batch)
    H, L = LSTM_HIDDEN_SIZE, LSTM_LAYER_NUM
    TB = 128                     # two grid steps -> both TCs get work on v7x

    # inputs = cat(lrs, preprocess_gradients(grads)[2 cols], params, loss) -> (N, 5)
    x = jax.random.normal(k_x, (N, INPUT_SIZE), dtype=jnp.float32)
    # MetaOptimizer.initialize: h0/c0 start as zeros (kernel keeps them as (L, H, N))
    h0_t = jnp.zeros((L, H, N), dtype=jnp.float32)
    c0_t = jnp.zeros((L, H, N), dtype=jnp.float32)

    params = init_params(k_p)

    lr, h_new, c_new = meta_optimizer_forward(x, h0_t, c0_t, params, block_batch=TB)
    jax.block_until_ready((lr, h_new, c_new))

    # Reference uses the PyTorch (L, N, H) convention.
    h0 = jnp.transpose(h0_t, (0, 2, 1))
    c0 = jnp.transpose(c0_t, (0, 2, 1))
    lr_ref, h_ref, c_ref = meta_optimizer_reference(x, h0, c0, params)
    np.testing.assert_allclose(np.asarray(lr), np.asarray(lr_ref), rtol=1e-5, atol=2e-5)
    np.testing.assert_allclose(np.asarray(h_new), np.asarray(jnp.transpose(h_ref, (0, 2, 1))),
                               rtol=1e-5, atol=2e-5)
    np.testing.assert_allclose(np.asarray(c_new), np.asarray(jnp.transpose(c_ref, (0, 2, 1))),
                               rtol=1e-5, atol=2e-5)

    # TODO(synk): meta_update's preprocess_gradients / histogram logging are host-side glue, not kernelized.
    print("KERNEL_OK")
</pallas_src>

<mosaic_0001>
module attributes {stable_mosaic.version = 11 : i64} {
  func.func @meta_optimizer_kernel(%arg0: i32, %arg1: memref<5x128xf32, #tpu.memory_space<vmem>>, %arg2: memref<2x32x128xf32, #tpu.memory_space<vmem>>, %arg3: memref<2x32x128xf32, #tpu.memory_space<vmem>>, %arg4: memref<128x5xf32, #tpu.memory_space<vmem>>, %arg5: memref<128x32xf32, #tpu.memory_space<vmem>>, %arg6: memref<128x1xf32, #tpu.memory_space<vmem>>, %arg7: memref<128x32xf32, #tpu.memory_space<vmem>>, %arg8: memref<128x32xf32, #tpu.memory_space<vmem>>, %arg9: memref<128x1xf32, #tpu.memory_space<vmem>>, %arg10: memref<32x1xf32, #tpu.memory_space<vmem>>, %arg11: memref<1x1xf32, #tpu.memory_space<smem>>, %arg12: memref<1x128xf32, #tpu.memory_space<vmem>>, %arg13: memref<2x32x128xf32, #tpu.memory_space<vmem>>, %arg14: memref<2x32x128xf32, #tpu.memory_space<vmem>>) attributes {dimension_semantics = [#tpu.dimension_semantics<parallel>], iteration_bounds = array<i64: 2>, scalar_prefetch = 0 : i64, scratch_operands = 0 : i64, tpu.core_type = #tpu.core_type<tc>, window_params = [{transform_indices = @transform_0, window_bounds = array<i64: 5, 128>}, {transform_indices = @transform_1, window_bounds = array<i64: 2, 32, 128>}, {transform_indices = @transform_2, window_bounds = array<i64: 2, 32, 128>}, {pipeline_mode = #tpu.pipeline_mode<synchronous>, transform_indices = @transform_3, window_bounds = array<i64: 128, 5>}, {pipeline_mode = #tpu.pipeline_mode<synchronous>, transform_indices = @transform_4, window_bounds = array<i64: 128, 32>}, {pipeline_mode = #tpu.pipeline_mode<synchronous>, transform_indices = @transform_5, window_bounds = array<i64: 128, 1>}, {pipeline_mode = #tpu.pipeline_mode<synchronous>, transform_indices = @transform_6, window_bounds = array<i64: 128, 32>}, {pipeline_mode = #tpu.pipeline_mode<synchronous>, transform_indices = @transform_7, window_bounds = array<i64: 128, 32>}, {pipeline_mode = #tpu.pipeline_mode<synchronous>, transform_indices = @transform_8, window_bounds = array<i64: 128, 1>}, {pipeline_mode = #tpu.pipeline_mode<synchronous>, transform_indices = @transform_9, window_bounds = array<i64: 32, 1>}, {transform_indices = @transform_10, window_bounds = array<i64: 1, 1>}, {transform_indices = @transform_11, window_bounds = array<i64: 1, 128>}, {transform_indices = @transform_12, window_bounds = array<i64: 2, 32, 128>}, {transform_indices = @transform_13, window_bounds = array<i64: 2, 32, 128>}]} {
    %c0 = arith.constant 0 : index
    %c0_0 = arith.constant 0 : index
    %0 = vector.load %arg1[%c0, %c0_0] : memref<5x128xf32, #tpu.memory_space<vmem>>, vector<5x128xf32>
    %c0_1 = arith.constant 0 : index
    %c0_2 = arith.constant 0 : index
    %c0_3 = arith.constant 0 : index
    %1 = vector.load %arg2[%c0_1, %c0_2, %c0_3] : memref<2x32x128xf32, #tpu.memory_space<vmem>>, vector<1x32x128xf32>
    %2 = vector.shape_cast %1 : vector<1x32x128xf32> to vector<32x128xf32>
    %c0_4 = arith.constant 0 : index
    %c0_5 = arith.constant 0 : index
    %c0_6 = arith.constant 0 : index
    %3 = vector.load %arg3[%c0_4, %c0_5, %c0_6] : memref<2x32x128xf32, #tpu.memory_space<vmem>>, vector<1x32x128xf32>
    %4 = vector.shape_cast %3 : vector<1x32x128xf32> to vector<32x128xf32>
    %c0_7 = arith.constant 0 : index
    %c0_8 = arith.constant 0 : index
    %5 = vector.load %arg4[%c0_7, %c0_8] : memref<128x5xf32, #tpu.memory_space<vmem>>, vector<128x5xf32>
    %cst = arith.constant dense<0.000000e+00> : vector<128x128xf32>
    %6 = tpu.matmul %5, %0, %cst {dimension_numbers = #tpu.dot_dimension_numbers<[1], [0], [0], [1], [0, 0, 1, 1], [], []>} : vector<128x5xf32>, vector<5x128xf32>, vector<128x128xf32> -> vector<128x128xf32>
    %c0_9 = arith.constant 0 : index
    %c0_10 = arith.constant 0 : index
    %7 = vector.load %arg5[%c0_9, %c0_10] : memref<128x32xf32, #tpu.memory_space<vmem>>, vector<128x32xf32>
    %cst_11 = arith.constant dense<0.000000e+00> : vector<128x128xf32>
    %8 = tpu.matmul %7, %2, %cst_11 {dimension_numbers = #tpu.dot_dimension_numbers<[1], [0], [0], [1], [0, 0, 1, 1], [], []>} : vector<128x32xf32>, vector<32x128xf32>, vector<128x128xf32> -> vector<128x128xf32>
    %9 = arith.addf %6, %8 : vector<128x128xf32>
    %c0_12 = arith.constant 0 : index
    %c0_13 = arith.constant 0 : index
    %10 = vector.load %arg6[%c0_12, %c0_13] : memref<128x1xf32, #tpu.memory_space<vmem>>, vector<128x1xf32>
    %11 = vector.broadcast %10 : vector<128x1xf32> to vector<128x128xf32>
    %12 = arith.addf %9, %11 : vector<128x128xf32>
    %13 = vector.extract_strided_slice %12 {offsets = [0, 0], sizes = [32, 128], strides = [1, 1]} : vector<128x128xf32> to vector<32x128xf32>
    %cst_14 = arith.constant 5.000000e-01 : f32
    %14 = vector.broadcast %cst_14 : f32 to vector<32x128xf32>
    %15 = arith.mulf %14, %13 : vector<32x128xf32>
    %16 = math.tanh %15 : vector<32x128xf32>
    %cst_15 = arith.constant 1.000000e+00 : f32
    %17 = vector.broadcast %cst_15 : f32 to vector<32x128xf32>
    %18 = arith.addf %16, %17 : vector<32x128xf32>
    %cst_16 = arith.constant 5.000000e-01 : f32
    %19 = vector.broadcast %cst_16 : f32 to vector<32x128xf32>
    %20 = arith.mulf %19, %18 : vector<32x128xf32>
    %21 = vector.extract_strided_slice %12 {offsets = [32, 0], sizes = [32, 128], strides = [1, 1]} : vector<128x128xf32> to vector<32x128xf32>
    %cst_17 = arith.constant 5.000000e-01 : f32
    %22 = vector.broadcast %cst_17 : f32 to vector<32x128xf32>
    %23 = arith.mulf %22, %21 : vector<32x128xf32>
    %24 = math.tanh %23 : vector<32x128xf32>
    %cst_18 = arith.constant 1.000000e+00 : f32
    %25 = vector.broadcast %cst_18 : f32 to vector<32x128xf32>
    %26 = arith.addf %24, %25 : vector<32x128xf32>
    %cst_19 = arith.constant 5.000000e-01 : f32
    %27 = vector.broadcast %cst_19 : f32 to vector<32x128xf32>
    %28 = arith.mulf %27, %26 : vector<32x128xf32>
    %29 = vector.extract_strided_slice %12 {offsets = [64, 0], sizes = [32, 128], strides = [1, 1]} : vector<128x128xf32> to vector<32x128xf32>
    %30 = math.tanh %29 : vector<32x128xf32>
    %31 = vector.extract_strided_slice %12 {offsets = [96, 0], sizes = [32, 128], strides = [1, 1]} : vector<128x128xf32> to vector<32x128xf32>
    %cst_20 = arith.constant 5.000000e-01 : f32
    %32 = vector.broadcast %cst_20 : f32 to vector<32x128xf32>
    %33 = arith.mulf %32, %31 : vector<32x128xf32>
    %34 = math.tanh %33 : vector<32x128xf32>
    %cst_21 = arith.constant 1.000000e+00 : f32
    %35 = vector.broadcast %cst_21 : f32 to vector<32x128xf32>
    %36 = arith.addf %34, %35 : vector<32x128xf32>
    %cst_22 = arith.constant 5.000000e-01 : f32
    %37 = vector.broadcast %cst_22 : f32 to vector<32x128xf32>
    %38 = arith.mulf %37, %36 : vector<32x128xf32>
    %39 = arith.mulf %28, %4 : vector<32x128xf32>
    %40 = arith.mulf %20, %30 : vector<32x128xf32>
    %41 = arith.addf %39, %40 : vector<32x128xf32>
    %42 = math.tanh %41 : vector<32x128xf32>
    %43 = arith.mulf %38, %42 : vector<32x128xf32>
    %c0_23 = arith.constant 0 : index
    %c0_24 = arith.constant 0 : index
    %c0_25 = arith.constant 0 : index
    %44 = vector.load %arg13[%c0_23, %c0_24, %c0_25] : memref<2x32x128xf32, #tpu.memory_space<vmem>>, vector<1x32x128xf32>
    %45 = vector.shape_cast %44 : vector<1x32x128xf32> to vector<32x128xf32>
    %46 = vector.shape_cast %43 : vector<32x128xf32> to vector<1x32x128xf32>
    tpu.vector_store %arg13[%c0_23, %c0_24, %c0_25], %46 {strides = array<i32>} : memref<2x32x128xf32, #tpu.memory_space<vmem>>, vector<1x32x128xf32>,
    %c0_26 = arith.constant 0 : index
    %c0_27 = arith.constant 0 : index
    %c0_28 = arith.constant 0 : index
    %47 = vector.load %arg14[%c0_26, %c0_27, %c0_28] : memref<2x32x128xf32, #tpu.memory_space<vmem>>, vector<1x32x128xf32>
    %48 = vector.shape_cast %47 : vector<1x32x128xf32> to vector<32x128xf32>
    %49 = vector.shape_cast %41 : vector<32x128xf32> to vector<1x32x128xf32>
    tpu.vector_store %arg14[%c0_26, %c0_27, %c0_28], %49 {strides = array<i32>} : memref<2x32x128xf32, #tpu.memory_space<vmem>>, vector<1x32x128xf32>,
    %c1 = arith.constant 1 : index
    %c0_29 = arith.constant 0 : index
    %c0_30 = arith.constant 0 : index
    %50 = vector.load %arg2[%c1, %c0_29, %c0_30] : memref<2x32x128xf32, #tpu.memory_space<vmem>>, vector<1x32x128xf32>
    %51 = vector.shape_cast %50 : vector<1x32x128xf32> to vector<32x128xf32>
    %c1_31 = arith.constant 1 : index
    %c0_32 = arith.constant 0 : index
    %c0_33 = arith.constant 0 : index
    %52 = vector.load %arg3[%c1_31, %c0_32, %c0_33] : memref<2x32x128xf32, #tpu.memory_space<vmem>>, vector<1x32x128xf32>
    %53 = vector.shape_cast %52 : vector<1x32x128xf32> to vector<32x128xf32>
    %c0_34 = arith.constant 0 : index
    %c0_35 = arith.constant 0 : index
    %54 = vector.load %arg7[%c0_34, %c0_35] : memref<128x32xf32, #tpu.memory_space<vmem>>, vector<128x32xf32>
    %cst_36 = arith.constant dense<0.000000e+00> : vector<128x128xf32>
    %55 = tpu.matmul %54, %43, %cst_36 {dimension_numbers = #tpu.dot_dimension_numbers<[1], [0], [0], [1], [0, 0, 1, 1], [], []>} : vector<128x32xf32>, vector<32x128xf32>, vector<128x128xf32> -> vector<128x128xf32>
    %c0_37 = arith.constant 0 : index
    %c0_38 = arith.constant 0 : index
    %56 = vector.load %arg8[%c0_37, %c0_38] : memref<128x32xf32, #tpu.memory_space<vmem>>, vector<128x32xf32>
    %cst_39 = arith.constant dense<0.000000e+00> : vector<128x128xf32>
    %57 = tpu.matmul %56, %51, %cst_39 {dimension_numbers = #tpu.dot_dimension_numbers<[1], [0], [0], [1], [0, 0, 1, 1], [], []>} : vector<128x32xf32>, vector<32x128xf32>, vector<128x128xf32> -> vector<128x128xf32>
    %58 = arith.addf %55, %57 : vector<128x128xf32>
    %c0_40 = arith.constant 0 : index
    %c0_41 = arith.constant 0 : index
    %59 = vector.load %arg9[%c0_40, %c0_41] : memref<128x1xf32, #tpu.memory_space<vmem>>, vector<128x1xf32>
    %60 = vector.broadcast %59 : vector<128x1xf32> to vector<128x128xf32>
    %61 = arith.addf %58, %60 : vector<128x128xf32>
    %62 = vector.extract_strided_slice %61 {offsets = [0, 0], sizes = [32, 128], strides = [1, 1]} : vector<128x128xf32> to vector<32x128xf32>
    %cst_42 = arith.constant 5.000000e-01 : f32
    %63 = vector.broadcast %cst_42 : f32 to vector<32x128xf32>
    %64 = arith.mulf %63, %62 : vector<32x128xf32>
    %65 = math.tanh %64 : vector<32x128xf32>
    %cst_43 = arith.constant 1.000000e+00 : f32
    %66 = vector.broadcast %cst_43 : f32 to vector<32x128xf32>
    %67 = arith.addf %65, %66 : vector<32x128xf32>
    %cst_44 = arith.constant 5.000000e-01 : f32
    %68 = vector.broadcast %cst_44 : f32 to vector<32x128xf32>
    %69 = arith.mulf %68, %67 : vector<32x128xf32>
    %70 = vector.extract_strided_slice %61 {offsets = [32, 0], sizes = [32, 128], strides = [1, 1]} : vector<128x128xf32> to vector<32x128xf32>
    %cst_45 = arith.constant 5.000000e-01 : f32
    %71 = vector.broadcast %cst_45 : f32 to vector<32x128xf32>
    %72 = arith.mulf %71, %70 : vector<32x128xf32>
    %73 = math.tanh %72 : vector<32x128xf32>
    %cst_46 = arith.constant 1.000000e+00 : f32
    %74 = vector.broadcast %cst_46 : f32 to vector<32x128xf32>
    %75 = arith.addf %73, %74 : vector<32x128xf32>
    %cst_47 = arith.constant 5.000000e-01 : f32
    %76 = vector.broadcast %cst_47 : f32 to vector<32x128xf32>
    %77 = arith.mulf %76, %75 : vector<32x128xf32>
    %78 = vector.extract_strided_slice %61 {offsets = [64, 0], sizes = [32, 128], strides = [1, 1]} : vector<128x128xf32> to vector<32x128xf32>
    %79 = math.tanh %78 : vector<32x128xf32>
    %80 = vector.extract_strided_slice %61 {offsets = [96, 0], sizes = [32, 128], strides = [1, 1]} : vector<128x128xf32> to vector<32x128xf32>
    %cst_48 = arith.constant 5.000000e-01 : f32
    %81 = vector.broadcast %cst_48 : f32 to vector<32x128xf32>
    %82 = arith.mulf %81, %80 : vector<32x128xf32>
    %83 = math.tanh %82 : vector<32x128xf32>
    %cst_49 = arith.constant 1.000000e+00 : f32
    %84 = vector.broadcast %cst_49 : f32 to vector<32x128xf32>
    %85 = arith.addf %83, %84 : vector<32x128xf32>
    %cst_50 = arith.constant 5.000000e-01 : f32
    %86 = vector.broadcast %cst_50 : f32 to vector<32x128xf32>
    %87 = arith.mulf %86, %85 : vector<32x128xf32>
    %88 = arith.mulf %77, %53 : vector<32x128xf32>
    %89 = arith.mulf %69, %79 : vector<32x128xf32>
    %90 = arith.addf %88, %89 : vector<32x128xf32>
    %91 = math.tanh %90 : vector<32x128xf32>
    %92 = arith.mulf %87, %91 : vector<32x128xf32>
    %c1_51 = arith.constant 1 : index
    %c0_52 = arith.constant 0 : index
    %c0_53 = arith.constant 0 : index
    %93 = vector.load %arg13[%c1_51, %c0_52, %c0_53] : memref<2x32x128xf32, #tpu.memory_space<vmem>>, vector<1x32x128xf32>
    %94 = vector.shape_cast %93 : vector<1x32x128xf32> to vector<32x128xf32>
    %95 = vector.shape_cast %92 : vector<32x128xf32> to vector<1x32x128xf32>
    tpu.vector_store %arg13[%c1_51, %c0_52, %c0_53], %95 {strides = array<i32>} : memref<2x32x128xf32, #tpu.memory_space<vmem>>, vector<1x32x128xf32>,
    %c1_54 = arith.constant 1 : index
    %c0_55 = arith.constant 0 : index
    %c0_56 = arith.constant 0 : index
    %96 = vector.load %arg14[%c1_54, %c0_55, %c0_56] : memref<2x32x128xf32, #tpu.memory_space<vmem>>, vector<1x32x128xf32>
    %97 = vector.shape_cast %96 : vector<1x32x128xf32> to vector<32x128xf32>
    %98 = vector.shape_cast %90 : vector<32x128xf32> to vector<1x32x128xf32>
    tpu.vector_store %arg14[%c1_54, %c0_55, %c0_56], %98 {strides = array<i32>} : memref<2x32x128xf32, #tpu.memory_space<vmem>>, vector<1x32x128xf32>,
    %c0_57 = arith.constant 0 : index
    %c0_58 = arith.constant 0 : index
    %99 = vector.load %arg10[%c0_57, %c0_58] : memref<32x1xf32, #tpu.memory_space<vmem>>, vector<32x1xf32>
    %100 = vector.broadcast %99 : vector<32x1xf32> to vector<32x128xf32>
    %101 = arith.mulf %100, %92 : vector<32x128xf32>
    %cst_59 = arith.constant dense<0.000000e+00> : vector<128xf32>
    %102 = vector.multi_reduction <add>, %101, %cst_59 [0] : vector<32x128xf32> to vector<128xf32>
    %103 = vector.shape_cast %102 : vector<128xf32> to vector<1x128xf32>
    %c0_60 = arith.constant 0 : index
    %c0_61 = arith.constant 0 : index
    %104 = memref.load %arg11[%c0_60, %c0_61] : memref<1x1xf32, #tpu.memory_space<smem>>
    %105 = vector.broadcast %104 : f32 to vector<1x128xf32>
    %106 = arith.addf %103, %105 : vector<1x128xf32>
    %cst_62 = arith.constant 5.000000e-01 : f32
    %107 = vector.broadcast %cst_62 : f32 to vector<1x128xf32>
    %108 = arith.mulf %107, %106 : vector<1x128xf32>
    %109 = math.tanh %108 : vector<1x128xf32>
    %cst_63 = arith.constant 1.000000e+00 : f32
    %110 = vector.broadcast %cst_63 : f32 to vector<1x128xf32>
    %111 = arith.addf %109, %110 : vector<1x128xf32>
    %cst_64 = arith.constant 5.000000e-01 : f32
    %112 = vector.broadcast %cst_64 : f32 to vector<1x128xf32>
    %113 = arith.mulf %112, %111 : vector<1x128xf32>
    %c0_65 = arith.constant 0 : index
    %c0_66 = arith.constant 0 : index
    %114 = vector.load %arg12[%c0_65, %c0_66] : memref<1x128xf32, #tpu.memory_space<vmem>>, vector<1x128xf32>
    tpu.vector_store %arg12[%c0_65, %c0_66], %113 {strides = array<i32>} : memref<1x128xf32, #tpu.memory_space<vmem>>, vector<1x128xf32>,
    return
  }
  func.func @transform_0(%arg0: i32) -> (i32, i32) {
    %c0_i32 = arith.constant 0 : i32
    %c0_i32_0 = arith.constant 0 : i32
    return %c0_i32, %arg0 : i32, i32
  }
  func.func @transform_1(%arg0: i32) -> (i32, i32, i32) {
    %c0_i32 = arith.constant 0 : i32
    %c0_i32_0 = arith.constant 0 : i32
    %c0_i32_1 = arith.constant 0 : i32
    return %c0_i32, %c0_i32_0, %arg0 : i32, i32, i32
  }
  func.func @transform_2(%arg0: i32) -> (i32, i32, i32) {
    %c0_i32 = arith.constant 0 : i32
    %c0_i32_0 = arith.constant 0 : i32
    %c0_i32_1 = arith.constant 0 : i32
    return %c0_i32, %c0_i32_0, %arg0 : i32, i32, i32
  }
  func.func @transform_3(%arg0: i32) -> (i32, i32) {
    %c0_i32 = arith.constant 0 : i32
    %c0_i32_0 = arith.constant 0 : i32
    %c0_i32_1 = arith.constant 0 : i32
    return %c0_i32, %c0_i32_0 : i32, i32
  }
  func.func @transform_4(%arg0: i32) -> (i32, i32) {
    %c0_i32 = arith.constant 0 : i32
    %c0_i32_0 = arith.constant 0 : i32
    %c0_i32_1 = arith.constant 0 : i32
    return %c0_i32, %c0_i32_0 : i32, i32
  }
  func.func @transform_5(%arg0: i32) -> (i32, i32) {
    %c0_i32 = arith.constant 0 : i32
    %c0_i32_0 = arith.constant 0 : i32
    %c0_i32_1 = arith.constant 0 : i32
    return %c0_i32, %c0_i32_0 : i32, i32
  }
  func.func @transform_6(%arg0: i32) -> (i32, i32) {
    %c0_i32 = arith.constant 0 : i32
    %c0_i32_0 = arith.constant 0 : i32
    %c0_i32_1 = arith.constant 0 : i32
    return %c0_i32, %c0_i32_0 : i32, i32
  }
  func.func @transform_7(%arg0: i32) -> (i32, i32) {
    %c0_i32 = arith.constant 0 : i32
    %c0_i32_0 = arith.constant 0 : i32
    %c0_i32_1 = arith.constant 0 : i32
    return %c0_i32, %c0_i32_0 : i32, i32
  }
  func.func @transform_8(%arg0: i32) -> (i32, i32) {
    %c0_i32 = arith.constant 0 : i32
    %c0_i32_0 = arith.constant 0 : i32
    %c0_i32_1 = arith.constant 0 : i32
    return %c0_i32, %c0_i32_0 : i32, i32
  }
  func.func @transform_9(%arg0: i32) -> (i32, i32) {
    %c0_i32 = arith.constant 0 : i32
    %c0_i32_0 = arith.constant 0 : i32
    %c0_i32_1 = arith.constant 0 : i32
    return %c0_i32, %c0_i32_0 : i32, i32
  }
  func.func @transform_10(%arg0: i32) -> (i32, i32) {
    %c0_i32 = arith.constant 0 : i32
    %c0_i32_0 = arith.constant 0 : i32
    %c0_i32_1 = arith.constant 0 : i32
    return %c0_i32, %c0_i32_0 : i32, i32
  }
  func.func @transform_11(%arg0: i32) -> (i32, i32) {
    %c0_i32 = arith.constant 0 : i32
    %c0_i32_0 = arith.constant 0 : i32
    return %c0_i32, %arg0 : i32, i32
  }
  func.func @transform_12(%arg0: i32) -> (i32, i32, i32) {
    %c0_i32 = arith.constant 0 : i32
    %c0_i32_0 = arith.constant 0 : i32
    %c0_i32_1 = arith.constant 0 : i32
    return %c0_i32, %c0_i32_0, %arg0 : i32, i32, i32
  }
  func.func @transform_13(%arg0: i32) -> (i32, i32, i32) {
    %c0_i32 = arith.constant 0 : i32
    %c0_i32_0 = arith.constant 0 : i32
    %c0_i32_1 = arith.constant 0 : i32
    return %c0_i32, %c0_i32_0, %arg0 : i32, i32, i32
  }
}

</mosaic_0001>

<llo_original>
// kernel: tpu_custom_call.1
$region0: #{tpu_custom_call.1}
  #allocation0 [shape = 'u32[]', space=smem, size = 0x4, offset = 0x4, fixed_abs, tag = 'smem constant byte address 0x4 - core index']
  #allocation1 [shape = 'u32[72,128]{1,0:T(1,128)}', space=vmem, size = 0x9000, scoped, tag = 'internal scratch']
  #allocation2 [shape = 'f32[1,1]{1,0:T(1,128)S(6)}', space=smem, size = 0x200, scoped, tag = 'scoped memory for tpu_custom_call.1']
  %s0 = inlined_call_operand.vmem [shape: f32[5,256], index: 0, kind: input, shape index: {}]
  %s1 = inlined_call_operand.vmem [shape: f32[2,32,256], index: 1, kind: input, shape index: {}]
  %s2 = inlined_call_operand.vmem [shape: f32[2,32,256], index: 2, kind: input, shape index: {}]
  %s3 = inlined_call_operand.vmem [shape: f32[128,5], index: 3, kind: input, shape index: {}]
  %s4 = inlined_call_operand.vmem [shape: f32[128,32], index: 4, kind: input, shape index: {}]
  %s5 = inlined_call_operand.vmem [shape: f32[128,1], index: 5, kind: input, shape index: {}]
  %s6 = inlined_call_operand.vmem [shape: f32[128,32], index: 6, kind: input, shape index: {}]
  %s7 = inlined_call_operand.vmem [shape: f32[128,32], index: 7, kind: input, shape index: {}]
  %s8 = inlined_call_operand.vmem [shape: f32[128,1], index: 8, kind: input, shape index: {}]
  %s9 = inlined_call_operand.vmem [shape: f32[32,1], index: 9, kind: input, shape index: {}]
  %s10 = inlined_call_operand.<no memory space> [shape: f32[1,1], index: 10, kind: input, shape index: {}]
  %s11 = inlined_call_operand.hbm [shape: f32[1,256], index: 11, kind: output, shape index: {0}]
  %s12 = inlined_call_operand.hbm [shape: f32[2,32,256], index: 12, kind: output, shape index: {1}]
  %s13 = inlined_call_operand.hbm [shape: f32[2,32,256], index: 13, kind: output, shape index: {2}]
  %14 = xla_tuple %s11, %s12, %s13
  %s15 = sld [smem:[#allocation0]]
  $region169: #{tpu_custom_call.1} parent=0
    _
  %s17 = ssub.s32 1, %s15
  %s18 = scalar_select 0, %s17, %s15
  %19 = sst [smem:[#allocation2]] %s10
  $region1: #{tpu_custom_call.1} parent=0
    #allocation3 [shape = 'u8[65536]{0}', space=vmem, size = 0x10000, scoped, tag = 'input window, operand 1']
    #allocation4 [shape = 'u8[65536]{0}', space=vmem, size = 0x10000, scoped, tag = 'input window, operand 2']
    #allocation5 [shape = 'u8[1024]{0}', space=vmem, size = 0x400, scoped, tag = 'output window, operand 0']
    #allocation6 [shape = 's32[2]{0}', space=sflag, size = 0x8, scoped, tag = 'scoped memory for tpu_custom_call.1']
    #allocation7 [shape = 'u8[65536]{0}', space=vmem, size = 0x10000, scoped, tag = 'output window, operand 1']
    #allocation8 [shape = 's32[2]{0}', space=sflag, size = 0x8, scoped, tag = 'scoped memory for tpu_custom_call.1']
    #allocation9 [shape = 'u8[65536]{0}', space=vmem, size = 0x10000, scoped, tag = 'output window, operand 2']
    %20 = vsyncpa [#allocation6], 0
    %s21 = scalar_lea.sflag [#allocation6], 1
    %22 = vsyncpa %s21, 0
    %23 = vsyncpa [#allocation8], 0
    %s24 = scalar_lea.sflag [#allocation8], 1
    %25 = vsyncpa %s24, 0
    loop: start=0, step=1, limit=4
    $region2: #{tpu_custom_call.1} parent=1 // loop_pre_header
      _
    $region3: #{tpu_custom_call.1} parent=1 // loop_header
      %s27 = sphi 0, %s31
      %p28 = scmp.ge.s32.totalorder %s27, 4
      %s37 = sphi 0, %s39
      %s40 = sphi 0, %s37
      %s41 = sphi 0, %s40
      %s57 = sphi 0, %s41
      %s63 = sphi 0, %s65
      %s66 = sphi 0, %s63
      %s67 = sphi 0, %s66
      %s83 = sphi 0, %s67
      %s89 = sphi 0, %s91
      %s92 = sphi 0, %s89
      %s93 = sphi 0, %s92
      %s109 = sphi 0, %s93
      %s113 = sphi 0, %s113
      %s115 = sphi 0, %s113
      %s116 = sphi 0, %s115
      %s130 = sphi 0, %s116
      %s134 = sphi 0, %s134
      %s136 = sphi 0, %s134
      %s137 = sphi 0, %s136
      %s151 = sphi 0, %s137
      %s155 = sphi 0, %s155
      %s157 = sphi 0, %s155
      %s158 = sphi 0, %s157
      %s172 = sphi 0, %s158
      %s176 = sphi 0, %s176
      %s178 = sphi 0, %s176
      %s179 = sphi 0, %s178
      %s193 = sphi 0, %s179
      %s197 = sphi 0, %s197
      %s199 = sphi 0, %s197
      %s200 = sphi 0, %s199
      %s214 = sphi 0, %s200
      %s218 = sphi 0, %s218
      %s220 = sphi 0, %s218
      %s221 = sphi 0, %s220
      %s235 = sphi 0, %s221
      %s239 = sphi 0, %s239
      %s241 = sphi 0, %s239
      %s242 = sphi 0, %s241
      %s256 = sphi 0, %s242
      %s260 = sphi 0, %s260
      %s262 = sphi 0, %s260
      %s263 = sphi 0, %s262
      %s277 = sphi 0, %s263
      %s283 = sphi 0, %s285
      %s286 = sphi 0, %s283
      %s287 = sphi 0, %s286
      %s303 = sphi 0, %s287
      %s309 = sphi 0, %s311
      %s312 = sphi 0, %s309
      %s313 = sphi 0, %s312
      %s329 = sphi 0, %s313
      %s335 = sphi 0, %s337
      %s338 = sphi 0, %s335
      %s339 = sphi 0, %s338
      %s355 = sphi 0, %s339
    $region4: #{tpu_custom_call.1} parent=1 // loop_header_branch
      %30 = sbr.rel (%p28) target = $region8
    $region5: #{tpu_custom_call.1} parent=1 // loop_body
      %s32 = ssub.s32 %s27, 1
      %s33 = ssub.s32 %s27, 2
      %s34 = sadd.s32 %s27, 1
      %s35 = ssub.s32 %s27, %s34
      %p36 = scmp.eq.s32.totalorder %s35, 0
      %s38 = sadd.s32 %s37, 1
      %s39 = scalar_select %p36, %s37, %s38
      %p42 = pneg %p36
      %p43 = scmp.eq.s32.totalorder %s27, 1
      %p44 = por %p42, %p43
      %p45 = scmp.ne.s32.totalorder %s37, %s40
      %p46 = scmp.eq.s32.totalorder %s27, 0
      %p47 = por %p45, %p46
      %p48 = scmp.ne.s32.totalorder %s37, %s40
      %p49 = scmp.eq.s32.totalorder %s32, 1
      %p50 = por %p48, %p49
      %p51 = scmp.ne.s32.totalorder %s40, %s41
      %p52 = scmp.eq.s32.totalorder %s32, 0
      %p53 = por %p51, %p52
      %p54 = scmp.ne.s32.totalorder %s40, %s41
      %p55 = scmp.eq.s32.totalorder %s33, 1
      %p56 = por %p54, %p55
      %p58 = scmp.ne.s32.totalorder %s41, %s57
      %p59 = scmp.eq.s32.totalorder %s33, 0
      %p60 = por %p58, %p59
      %s61 = ssub.s32 %s27, %s34
      %p62 = scmp.eq.s32.totalorder %s61, 0
      %s64 = sadd.s32 %s63, 1
      %s65 = scalar_select %p62, %s63, %s64
      %p68 = pneg %p62
      %p69 = scmp.eq.s32.totalorder %s27, 1
      %p70 = por %p68, %p69
      %p71 = scmp.ne.s32.totalorder %s63, %s66
      %p72 = scmp.eq.s32.totalorder %s27, 0
      %p73 = por %p71, %p72
      %p74 = scmp.ne.s32.totalorder %s63, %s66
      %p75 = scmp.eq.s32.totalorder %s32, 1
      %p76 = por %p74, %p75
      %p77 = scmp.ne.s32.totalorder %s66, %s67
      %p78 = scmp.eq.s32.totalorder %s32, 0
      %p79 = por %p77, %p78
      %p80 = scmp.ne.s32.totalorder %s66, %s67
      %p81 = scmp.eq.s32.totalorder %s33, 1
      %p82 = por %p80, %p81
      %p84 = scmp.ne.s32.totalorder %s67, %s83
      %p85 = scmp.eq.s32.totalorder %s33, 0
      %p86 = por %p84, %p85
      %s87 = ssub.s32 %s27, %s34
      %p88 = scmp.eq.s32.totalorder %s87, 0
      %s90 = sadd.s32 %s89, 1
      %s91 = scalar_select %p88, %s89, %s90
      %p94 = pneg %p88
      %p95 = scmp.eq.s32.totalorder %s27, 1
      %p96 = por %p94, %p95
      %p97 = scmp.ne.s32.totalorder %s89, %s92
      %p98 = scmp.eq.s32.totalorder %s27, 0
      %p99 = por %p97, %p98
      %p100 = scmp.ne.s32.totalorder %s89, %s92
      %p101 = scmp.eq.s32.totalorder %s32, 1
      %p102 = por %p100, %p101
      %p103 = scmp.ne.s32.totalorder %s92, %s93
      %p104 = scmp.eq.s32.totalorder %s32, 0
      %p105 = por %p103, %p104
      %p106 = scmp.ne.s32.totalorder %s92, %s93
      %p107 = scmp.eq.s32.totalorder %s33, 1
      %p108 = por %p106, %p107
      %p110 = scmp.ne.s32.totalorder %s93, %s109
      %p111 = scmp.eq.s32.totalorder %s33, 0
      %p112 = por %p110, %p111
      %s114 = sadd.s32 %s113, 1
      %p117 = scmp.eq.s32.totalorder %s27, 1
      %p118 = scmp.ne.s32.totalorder %s113, %s115
      %p119 = scmp.eq.s32.totalorder %s27, 0
      %p120 = por %p118, %p119
      %p121 = scmp.ne.s32.totalorder %s113, %s115
      %p122 = scmp.eq.s32.totalorder %s32, 1
      %p123 = por %p121, %p122
      %p124 = scmp.ne.s32.totalorder %s115, %s116
      %p125 = scmp.eq.s32.totalorder %s32, 0
      %p126 = por %p124, %p125
      %p127 = scmp.ne.s32.totalorder %s115, %s116
      %p128 = scmp.eq.s32.totalorder %s33, 1
      %p129 = por %p127, %p128
      %p131 = scmp.ne.s32.totalorder %s116, %s130
      %p132 = scmp.eq.s32.totalorder %s33, 0
      %p133 = por %p131, %p132
      %s135 = sadd.s32 %s134, 1
      %p138 = scmp.eq.s32.totalorder %s27, 1
      %p139 = scmp.ne.s32.totalorder %s134, %s136
      %p140 = scmp.eq.s32.totalorder %s27, 0
      %p141 = por %p139, %p140
      %p142 = scmp.ne.s32.totalorder %s134, %s136
      %p143 = scmp.eq.s32.totalorder %s32, 1
      %p144 = por %p142, %p143
      %p145 = scmp.ne.s32.totalorder %s136, %s137
      %p146 = scmp.eq.s32.totalorder %s32, 0
      %p147 = por %p145, %p146
      %p148 = scmp.ne.s32.totalorder %s136, %s137
      %p149 = scmp.eq.s32.totalorder %s33, 1
      %p150 = por %p148, %p149
      %p152 = scmp.ne.s32.totalorder %s137, %s151
      %p153 = scmp.eq.s32.totalorder %s33, 0
      %p154 = por %p152, %p153
      %s156 = sadd.s32 %s155, 1
      %p159 = scmp.eq.s32.totalorder %s27, 1
      %p160 = scmp.ne.s32.totalorder %s155, %s157
      %p161 = scmp.eq.s32.totalorder %s27, 0
      %p162 = por %p160, %p161
      %p163 = scmp.ne.s32.totalorder %s155, %s157
      %p164 = scmp.eq.s32.totalorder %s32, 1
      %p165 = por %p163, %p164
      %p166 = scmp.ne.s32.totalorder %s157, %s158
      %p167 = scmp.eq.s32.totalorder %s32, 0
      %p168 = por %p166, %p167
      %p169 = scmp.ne.s32.totalorder %s157, %s158
      %p170 = scmp.eq.s32.totalorder %s33, 1
      %p171 = por %p169, %p170
      %p173 = scmp.ne.s32.totalorder %s158, %s172
      %p174 = scmp.eq.s32.totalorder %s33, 0
      %p175 = por %p173, %p174
      %s177 = sadd.s32 %s176, 1
      %p180 = scmp.eq.s32.totalorder %s27, 1
      %p181 = scmp.ne.s32.totalorder %s176, %s178
      %p182 = scmp.eq.s32.totalorder %s27, 0
      %p183 = por %p181, %p182
      %p184 = scmp.ne.s32.totalorder %s176, %s178
      %p185 = scmp.eq.s32.totalorder %s32, 1
      %p186 = por %p184, %p185
      %p187 = scmp.ne.s32.totalorder %s178, %s179
      %p188 = scmp.eq.s32.totalorder %s32, 0
      %p189 = por %p187, %p188
      %p190 = scmp.ne.s32.totalorder %s178, %s179
      %p191 = scmp.eq.s32.totalorder %s33, 1
      %p192 = por %p190, %p191
      %p194 = scmp.ne.s32.totalorder %s179, %s193
      %p195 = scmp.eq.s32.totalorder %s33, 0
      %p196 = por %p194, %p195
      %s198 = sadd.s32 %s197, 1
      %p201 = scmp.eq.s32.totalorder %s27, 1
      %p202 = scmp.ne.s32.totalorder %s197, %s199
      %p203 = scmp.eq.s32.totalorder %s27, 0
      %p204 = por %p202, %p203
      %p205 = scmp.ne.s32.totalorder %s197, %s199
      %p206 = scmp.eq.s32.totalorder %s32, 1
      %p207 = por %p205, %p206
      %p208 = scmp.ne.s32.totalorder %s199, %s200
      %p209 = scmp.eq.s32.totalorder %s32, 0
      %p210 = por %p208, %p209
      %p211 = scmp.ne.s32.totalorder %s199, %s200
      %p212 = scmp.eq.s32.totalorder %s33, 1
      %p213 = por %p211, %p212
      %p215 = scmp.ne.s32.totalorder %s200, %s214
      %p216 = scmp.eq.s32.totalorder %s33, 0
      %p217 = por %p215, %p216
      %s219 = sadd.s32 %s218, 1
      %p222 = scmp.eq.s32.totalorder %s27, 1
      %p223 = scmp.ne.s32.totalorder %s218, %s220
      %p224 = scmp.eq.s32.totalorder %s27, 0
      %p225 = por %p223, %p224
      %p226 = scmp.ne.s32.totalorder %s218, %s220
      %p227 = scmp.eq.s32.totalorder %s32, 1
      %p228 = por %p226, %p227
      %p229 = scmp.ne.s32.totalorder %s220, %s221
      %p230 = scmp.eq.s32.totalorder %s32, 0
      %p231 = por %p229, %p230
      %p232 = scmp.ne.s32.totalorder %s220, %s221
      %p233 = scmp.eq.s32.totalorder %s33, 1
      %p234 = por %p232, %p233
      %p236 = scmp.ne.s32.totalorder %s221, %s235
      %p237 = scmp.eq.s32.totalorder %s33, 0
      %p238 = por %p236, %p237
      %s240 = sadd.s32 %s239, 1
      %p243 = scmp.eq.s32.totalorder %s27, 1
      %p244 = scmp.ne.s32.totalorder %s239, %s241
      %p245 = scmp.eq.s32.totalorder %s27, 0
      %p246 = por %p244, %p245
      %p247 = scmp.ne.s32.totalorder %s239, %s241
      %p248 = scmp.eq.s32.totalorder %s32, 1
      %p249 = por %p247, %p248
      %p250 = scmp.ne.s32.totalorder %s241, %s242
      %p251 = scmp.eq.s32.totalorder %s32, 0
      %p252 = por %p250, %p251
      %p253 = scmp.ne.s32.totalorder %s241, %s242
      %p254 = scmp.eq.s32.totalorder %s33, 1
      %p255 = por %p253, %p254
      %p257 = scmp.ne.s32.totalorder %s242, %s256
      %p258 = scmp.eq.s32.totalorder %s33, 0
      %p259 = por %p257, %p258
      %s261 = sadd.s32 %s260, 1
      %p264 = scmp.eq.s32.totalorder %s27, 1
      %p265 = scmp.ne.s32.totalorder %s260, %s262
      %p266 = scmp.eq.s32.totalorder %s27, 0
      %p267 = por %p265, %p266
      %p268 = scmp.ne.s32.totalorder %s260, %s262
      %p269 = scmp.eq.s32.totalorder %s32, 1
      %p270 = por %p268, %p269
      %p271 = scmp.ne.s32.totalorder %s262, %s263
      %p272 = scmp.eq.s32.totalorder %s32, 0
      %p273 = por %p271, %p272
      %p274 = scmp.ne.s32.totalorder %s262, %s263
      %p275 = scmp.eq.s32.totalorder %s33, 1
      %p276 = por %p274, %p275
      %p278 = scmp.ne.s32.totalorder %s263, %s277
      %p279 = scmp.eq.s32.totalorder %s33, 0
      %p280 = por %p278, %p279
      %s281 = ssub.s32 %s27, %s34
      %p282 = scmp.eq.s32.totalorder %s281, 0
      %s284 = sadd.s32 %s283, 1
      %s285 = scalar_select %p282, %s283, %s284
      %p288 = pneg %p282
      %p289 = scmp.eq.s32.totalorder %s27, 1
      %p290 = por %p288, %p289
      %p291 = scmp.ne.s32.totalorder %s283, %s286
      %p292 = scmp.eq.s32.totalorder %s27, 0
      %p293 = por %p291, %p292
      %p294 = scmp.ne.s32.totalorder %s283, %s286
      %p295 = scmp.eq.s32.totalorder %s32, 1
      %p296 = por %p294, %p295
      %p297 = scmp.ne.s32.totalorder %s286, %s287
      %p298 = scmp.eq.s32.totalorder %s32, 0
      %p299 = por %p297, %p298
      %p300 = scmp.ne.s32.totalorder %s286, %s287
      %p301 = scmp.eq.s32.totalorder %s33, 1
      %p302 = por %p300, %p301
      %p304 = scmp.ne.s32.totalorder %s287, %s303
      %p305 = scmp.eq.s32.totalorder %s33, 0
      %p306 = por %p304, %p305
      %s307 = ssub.s32 %s27, %s34
      %p308 = scmp.eq.s32.totalorder %s307, 0
      %s310 = sadd.s32 %s309, 1
      %s311 = scalar_select %p308, %s309, %s310
      %p314 = pneg %p308
      %p315 = scmp.eq.s32.totalorder %s27, 1
      %p316 = por %p314, %p315
      %p317 = scmp.ne.s32.totalorder %s309, %s312
      %p318 = scmp.eq.s32.totalorder %s27, 0
      %p319 = por %p317, %p318
      %p320 = scmp.ne.s32.totalorder %s309, %s312
      %p321 = scmp.eq.s32.totalorder %s32, 1
      %p322 = por %p320, %p321
      %p323 = scmp.ne.s32.totalorder %s312, %s313
      %p324 = scmp.eq.s32.totalorder %s32, 0
      %p325 = por %p323, %p324
      %p326 = scmp.ne.s32.totalorder %s312, %s313
      %p327 = scmp.eq.s32.totalorder %s33, 1
      %p328 = por %p326, %p327
      %p330 = scmp.ne.s32.totalorder %s313, %s329
      %p331 = scmp.eq.s32.totalorder %s33, 0
      %p332 = por %p330, %p331
      %s333 = ssub.s32 %s27, %s34
      %p334 = scmp.eq.s32.totalorder %s333, 0
      %s336 = sadd.s32 %s335, 1
      %s337 = scalar_select %p334, %s335, %s336
      %p340 = pneg %p334
      %p341 = scmp.eq.s32.totalorder %s27, 1
      %p342 = por %p340, %p341
      %p343 = scmp.ne.s32.totalorder %s335, %s338
      %p344 = scmp.eq.s32.totalorder %s27, 0
      %p345 = por %p343, %p344
      %p346 = scmp.ne.s32.totalorder %s335, %s338
      %p347 = scmp.eq.s32.totalorder %s32, 1
      %p348 = por %p346, %p347
      %p349 = scmp.ne.s32.totalorder %s338, %s339
      %p350 = scmp.eq.s32.totalorder %s32, 0
      %p351 = por %p349, %p350
      %p352 = scmp.ne.s32.totalorder %s338, %s339
      %p353 = scmp.eq.s32.totalorder %s33, 1
      %p354 = por %p352, %p353
      %p356 = scmp.ne.s32.totalorder %s339, %s355
      %p357 = scmp.eq.s32.totalorder %s33, 0
      %p358 = por %p356, %p357
      %p359 = scmp.le.s32.totalorder 1, %s27
      %p360 = scmp.lt.s32.totalorder %s27, 3
      %p361 = pnand %p359, %p360
      %p362 = pneg %p361
      // Predicated region
      $region9: #{tpu_custom_call.1} parent=5 // pred_check
        _
      $region10: #{tpu_custom_call.1} parent=5 // pred_check_branch
        %364 = sbr.rel (%p361) target = $region12
      $region11: #{tpu_custom_call.1} parent=5 // pred_region
        %s365 = ssub.s32 %s27, 1
        // Predicated region
        $region13: #{tpu_custom_call.1} parent=11 // pred_check
          %p366 = pneg %p126
        $region14: #{tpu_custom_call.1} parent=11 // pred_check_branch
          %368 = sbr.rel (%p366) target = $region16
        $region15: #{tpu_custom_call.1} parent=11 // pred_region
          _
        $region16: #{tpu_custom_call.1} parent=11 // pred_fallthru
          _
        // Predicated region
        $region17: #{tpu_custom_call.1} parent=11 // pred_check
          %p369 = pneg %p147
        $region18: #{tpu_custom_call.1} parent=11 // pred_check_branch
          %371 = sbr.rel (%p369) target = $region20
        $region19: #{tpu_custom_call.1} parent=11 // pred_region
          _
        $region20: #{tpu_custom_call.1} parent=11 // pred_fallthru
          _
        // Predicated region
        $region21: #{tpu_custom_call.1} parent=11 // pred_check
          %p372 = pneg %p168
        $region22: #{tpu_custom_call.1} parent=11 // pred_check_branch
          %374 = sbr.rel (%p372) target = $region24
        $region23: #{tpu_custom_call.1} parent=11 // pred_region
          _
        $region24: #{tpu_custom_call.1} parent=11 // pred_fallthru
          _
        // Predicated region
        $region25: #{tpu_custom_call.1} parent=11 // pred_check
          %p375 = pneg %p189
        $region26: #{tpu_custom_call.1} parent=11 // pred_check_branch
          %377 = sbr.rel (%p375) target = $region28
        $region27: #{tpu_custom_call.1} parent=11 // pred_region
          _
        $region28: #{tpu_custom_call.1} parent=11 // pred_fallthru
          _
        // Predicated region
        $region29: #{tpu_custom_call.1} parent=11 // pred_check
          %p378 = pneg %p210
        $region30: #{tpu_custom_call.1} parent=11 // pred_check_branch
          %380 = sbr.rel (%p378) target = $region32
        $region31: #{tpu_custom_call.1} parent=11 // pred_region
          _
        $region32: #{tpu_custom_call.1} parent=11 // pred_fallthru
          _
        // Predicated region
        $region33: #{tpu_custom_call.1} parent=11 // pred_check
          %p381 = pneg %p231
        $region34: #{tpu_custom_call.1} parent=11 // pred_check_branch
          %383 = sbr.rel (%p381) target = $region36
        $region35: #{tpu_custom_call.1} parent=11 // pred_region
          _
        $region36: #{tpu_custom_call.1} parent=11 // pred_fallthru
          _
        // Predicated region
        $region37: #{tpu_custom_call.1} parent=11 // pred_check
          %p384 = pneg %p252
        $region38: #{tpu_custom_call.1} parent=11 // pred_check_branch
          %386 = sbr.rel (%p384) target = $region40
        $region39: #{tpu_custom_call.1} parent=11 // pred_region
          _
        $region40: #{tpu_custom_call.1} parent=11 // pred_fallthru
          _
        // Predicated region
        $region41: #{tpu_custom_call.1} parent=11 // pred_check
          %p387 = pneg %p273
        $region42: #{tpu_custom_call.1} parent=11 // pred_check_branch
          %389 = sbr.rel (%p387) target = $region44
        $region43: #{tpu_custom_call.1} parent=11 // pred_region
          _
        $region44: #{tpu_custom_call.1} parent=11 // pred_fallthru
          _
      $region12: #{tpu_custom_call.1} parent=5 // pred_fallthru
        _
      %p390 = scmp.lt.s32.totalorder %s27, 2
      // Predicated region
      $region45: #{tpu_custom_call.1} parent=5 // pred_check
        %p391 = pneg %p390
      $region46: #{tpu_custom_call.1} parent=5 // pred_check_branch
        %393 = sbr.rel (%p391) target = $region48
      $region47: #{tpu_custom_call.1} parent=5 // pred_region
        // Predicated region
        $region49: #{tpu_custom_call.1} parent=47 // pred_check
          %p394 = pneg %p47
        $region50: #{tpu_custom_call.1} parent=47 // pred_check_branch
          %396 = sbr.rel (%p394) target = $region52
        $region51: #{tpu_custom_call.1} parent=47 // pred_region
          %p397 = scmp.lt.s32.totalorder %s27, 1
          %s398 = scalar_select %p397, %s27, 1
          %s399 = smul.addr %s398, 8
          %s400 = scalar_lea.vmem %s0, %s399
        $region52: #{tpu_custom_call.1} parent=47 // pred_fallthru
          _
        // Predicated region
        $region53: #{tpu_custom_call.1} parent=47 // pred_check
          %p401 = pneg %p73
        $region54: #{tpu_custom_call.1} parent=47 // pred_check_branch
          %403 = sbr.rel (%p401) target = $region56
        $region55: #{tpu_custom_call.1} parent=47 // pred_region
          %s404 = sand.u32 %s63, 1
          %s405 = sand.u32 %s63, 1
          %s406 = smul.addr %s405, 64
          %s407 = scalar_lea.vmem [#allocation3], %s406
          %s408 = smul.addr %s27, 8
          %s409 = scalar_lea.vmem %s1, %s408
          // Predicated region
          $region57: #{tpu_custom_call.1} parent=55 // pred_check
            _
          $region58: #{tpu_custom_call.1} parent=55 // pred_check_branch
            %411 = sbr.rel (0) target = $region60
          $region59: #{tpu_custom_call.1} parent=55 // pred_region
            // Predicated region
            $region61: #{tpu_custom_call.1} parent=59 // pred_check
              _
            $region62: #{tpu_custom_call.1} parent=59 // pred_check_branch
              %413 = sbr.rel (0) target = $region64
            $region63: #{tpu_custom_call.1} parent=59 // pred_region
              // Predicated region
              $region76: #{tpu_custom_call.1} parent=63 // pred_check
                _
              $region77: #{tpu_custom_call.1} parent=63 // pred_check_branch
                %443 = sbr.rel (0) target = $region79
              $region78: #{tpu_custom_call.1} parent=63 // pred_region
                loop: start=0, step=1, limit=1
                $region80: #{tpu_custom_call.1} parent=78 // loop_pre_header
                  _
                $region81: #{tpu_custom_call.1} parent=78 // loop_header
                  %s445 = sphi 0, %s449
                  %p446 = scmp.ge.s32.totalorder %s445, 1
                  %s450 = sphi %s409, %s409
                  %s451 = sphi %s407, %s407
                $region82: #{tpu_custom_call.1} parent=78 // loop_header_branch
                  %448 = sbr.rel (%p446) target = $region86
                $region83: #{tpu_custom_call.1} parent=78 // loop_body
                  %v452 = vld [vmem:[%s450] sm:$0xff]
                  %453 = vst [vmem:[%s451] sm:$0xff] %v452
                  %v454 = vld [vmem:[%s450 + $0x10] sm:$0xff]
                  %455 = vst [vmem:[%s451 + $0x8] sm:$0xff] %v454
                  %v456 = vld [vmem:[%s450 + $0x20] sm:$0xff]
                  %457 = vst [vmem:[%s451 + $0x10] sm:$0xff] %v456
                  %v458 = vld [vmem:[%s450 + $0x30] sm:$0xff]
                  %459 = vst [vmem:[%s451 + $0x18] sm:$0xff] %v458
                  %v460 = vld [vmem:[%s450 + $0x40] sm:$0xff]
                  %461 = vst [vmem:[%s451 + $0x20] sm:$0xff] %v460
                  %v462 = vld [vmem:[%s450 + $0x50] sm:$0xff]
                  %463 = vst [vmem:[%s451 + $0x28] sm:$0xff] %v462
                  %v464 = vld [vmem:[%s450 + $0x60] sm:$0xff]
                  %465 = vst [vmem:[%s451 + $0x30] sm:$0xff] %v464
                  %v466 = vld [vmem:[%s450 + $0x70] sm:$0xff]
                  %467 = vst [vmem:[%s451 + $0x38] sm:$0xff] %v466
                $region84: #{tpu_custom_call.1} parent=78 // loop_footer
                  %s449 = sadd.s32 1, %s445
                $region85: #{tpu_custom_call.1} parent=78 // loop_footer_branch
                  %444 = sbr.rel target = $region81
                $region86: #{tpu_custom_call.1} parent=78 // loop_exit
                  _
              $region79: #{tpu_custom_call.1} parent=63 // pred_fallthru
                _
              // Predicated region
              $region87: #{tpu_custom_call.1} parent=63 // pred_check
                _
              $region88: #{tpu_custom_call.1} parent=63 // pred_check_branch
                %469 = sbr.rel target = $region90
              $region89: #{tpu_custom_call.1} parent=63 // pred_region
                _
              $region90: #{tpu_custom_call.1} parent=63 // pred_fallthru
                _
            $region64: #{tpu_custom_call.1} parent=59 // pred_fallthru
              _
            // Predicated region
            $region65: #{tpu_custom_call.1} parent=59 // pred_check
              _
            $region66: #{tpu_custom_call.1} parent=59 // pred_check_branch
              %415 = sbr.rel target = $region68
            $region67: #{tpu_custom_call.1} parent=59 // pred_region
              %s417 = ssub.s32 256, 1
              loop: start=0, step=1, limit=1
              $region69: #{tpu_custom_call.1} parent=67 // loop_pre_header
                _
              $region70: #{tpu_custom_call.1} parent=67 // loop_header
                %s419 = sphi 0, %s423
                %p420 = scmp.ge.s32.totalorder %s419, 1
                %s424 = sphi %s409, %s409
                %s425 = sphi %s407, %s407
              $region71: #{tpu_custom_call.1} parent=67 // loop_header_branch
                %422 = sbr.rel (%p420) target = $region75
              $region72: #{tpu_custom_call.1} parent=67 // loop_body
                %v426 = vld [vmem:[%s424] sm:%s417]
                %427 = vst [vmem:[%s425] sm:%s417] %v426
                %v428 = vld [vmem:[%s424 + $0x10] sm:%s417]
                %429 = vst [vmem:[%s425 + $0x8] sm:%s417] %v428
                %v430 = vld [vmem:[%s424 + $0x20] sm:%s417]
                %431 = vst [vmem:[%s425 + $0x10] sm:%s417] %v430
                %v432 = vld [vmem:[%s424 + $0x30] sm:%s417]
                %433 = vst [vmem:[%s425 + $0x18] sm:%s417] %v432
                %v434 = vld [vmem:[%s424 + $0x40] sm:%s417]
                %435 = vst [vmem:[%s425 + $0x20] sm:%s417] %v434
                %v436 = vld [vmem:[%s424 + $0x50] sm:%s417]
                %437 = vst [vmem:[%s425 + $0x28] sm:%s417] %v436
                %v438 = vld [vmem:[%s424 + $0x60] sm:%s417]
                %439 = vst [vmem:[%s425 + $0x30] sm:%s417] %v438
                %v440 = vld [vmem:[%s424 + $0x70] sm:%s417]
                %441 = vst [vmem:[%s425 + $0x38] sm:%s417] %v440
              $region73: #{tpu_custom_call.1} parent=67 // loop_footer
                %s423 = sadd.s32 1, %s419
              $region74: #{tpu_custom_call.1} parent=67 // loop_footer_branch
                %418 = sbr.rel target = $region70
              $region75: #{tpu_custom_call.1} parent=67 // loop_exit
                _
            $region68: #{tpu_custom_call.1} parent=59 // pred_fallthru
              _
          $region60: #{tpu_custom_call.1} parent=55 // pred_fallthru
            _
          %470 = vnop
        $region56: #{tpu_custom_call.1} parent=47 // pred_fallthru
          _
        // Predicated region
        $region91: #{tpu_custom_call.1} parent=47 // pred_check
          %p471 = pneg %p99
        $region92: #{tpu_custom_call.1} parent=47 // pred_check_branch
          %473 = sbr.rel (%p471) target = $region94
        $region93: #{tpu_custom_call.1} parent=47 // pred_region
          %s474 = sand.u32 %s89, 1
          %s475 = sand.u32 %s89, 1
          %s476 = smul.addr %s475, 64
          %s477 = scalar_lea.vmem [#allocation4], %s476
          %s478 = smul.addr %s27, 8
          %s479 = scalar_lea.vmem %s2, %s478
          // Predicated region
          $region95: #{tpu_custom_call.1} parent=93 // pred_check
            _
          $region96: #{tpu_custom_call.1} parent=93 // pred_check_branch
            %481 = sbr.rel (0) target = $region98
          $region97: #{tpu_custom_call.1} parent=93 // pred_region
            // Predicated region
            $region99: #{tpu_custom_call.1} parent=97 // pred_check
              _
            $region100: #{tpu_custom_call.1} parent=97 // pred_check_branch
              %483 = sbr.rel (0) target = $region102
            $region101: #{tpu_custom_call.1} parent=97 // pred_region
              // Predicated region
              $region114: #{tpu_custom_call.1} parent=101 // pred_check
                _
              $region115: #{tpu_custom_call.1} parent=101 // pred_check_branch
                %513 = sbr.rel (0) target = $region117
              $region116: #{tpu_custom_call.1} parent=101 // pred_region
                loop: start=0, step=1, limit=1
                $region118: #{tpu_custom_call.1} parent=116 // loop_pre_header
                  _
                $region119: #{tpu_custom_call.1} parent=116 // loop_header
                  %s515 = sphi 0, %s519
                  %p516 = scmp.ge.s32.totalorder %s515, 1
                  %s520 = sphi %s479, %s479
                  %s521 = sphi %s477, %s477
                $region120: #{tpu_custom_call.1} parent=116 // loop_header_branch
                  %518 = sbr.rel (%p516) target = $region124
                $region121: #{tpu_custom_call.1} parent=116 // loop_body
                  %v522 = vld [vmem:[%s520] sm:$0xff]
                  %523 = vst [vmem:[%s521] sm:$0xff] %v522
                  %v524 = vld [vmem:[%s520 + $0x10] sm:$0xff]
                  %525 = vst [vmem:[%s521 + $0x8] sm:$0xff] %v524
                  %v526 = vld [vmem:[%s520 + $0x20] sm:$0xff]
                  %527 = vst [vmem:[%s521 + $0x10] sm:$0xff] %v526
                  %v528 = vld [vmem:[%s520 + $0x30] sm:$0xff]
                  %529 = vst [vmem:[%s521 + $0x18] sm:$0xff] %v528
                  %v530 = vld [vmem:[%s520 + $0x40] sm:$0xff]
                  %531 = vst [vmem:[%s521 + $0x20] sm:$0xff] %v530
                  %v532 = vld [vmem:[%s520 + $0x50] sm:$0xff]
                  %533 = vst [vmem:[%s521 + $0x28] sm:$0xff] %v532
                  %v534 = vld [vmem:[%s520 + $0x60] sm:$0xff]
                  %535 = vst [vmem:[%s521 + $0x30] sm:$0xff] %v534
                  %v536 = vld [vmem:[%s520 + $0x70] sm:$0xff]
                  %537 = vst [vmem:[%s521 + $0x38] sm:$0xff] %v536
                $region122: #{tpu_custom_call.1} parent=116 // loop_footer
                  %s519 = sadd.s32 1, %s515
                $region123: #{tpu_custom_call.1} parent=116 // loop_footer_branch
                  %514 = sbr.rel target = $region119
                $region124: #{tpu_custom_call.1} parent=116 // loop_exit
                  _
              $region117: #{tpu_custom_call.1} parent=101 // pred_fallthru
                _
              // Predicated region
              $region125: #{tpu_custom_call.1} parent=101 // pred_check
                _
              $region126: #{tpu_custom_call.1} parent=101 // pred_check_branch
                %539 = sbr.rel target = $region128
              $region127: #{tpu_custom_call.1} parent=101 // pred_region
                _
              $region128: #{tpu_custom_call.1} parent=101 // pred_fallthru
                _
            $region102: #{tpu_custom_call.1} parent=97 // pred_fallthru
              _
            // Predicated region
            $region103: #{tpu_custom_call.1} parent=97 // pred_check
              _
            $region104: #{tpu_custom_call.1} parent=97 // pred_check_branch
              %485 = sbr.rel target = $region106
            $region105: #{tpu_custom_call.1} parent=97 // pred_region
              %s487 = ssub.s32 256, 1
              loop: start=0, step=1, limit=1
              $region107: #{tpu_custom_call.1} parent=105 // loop_pre_header
                _
              $region108: #{tpu_custom_call.1} parent=105 // loop_header
                %s489 = sphi 0, %s493
                %p490 = scmp.ge.s32.totalorder %s489, 1
                %s494 = sphi %s479, %s479
                %s495 = sphi %s477, %s477
              $region109: #{tpu_custom_call.1} parent=105 // loop_header_branch
                %492 = sbr.rel (%p490) target = $region113
              $region110: #{tpu_custom_call.1} parent=105 // loop_body
                %v496 = vld [vmem:[%s494] sm:%s487]
                %497 = vst [vmem:[%s495] sm:%s487] %v496
                %v498 = vld [vmem:[%s494 + $0x10] sm:%s487]
                %499 = vst [vmem:[%s495 + $0x8] sm:%s487] %v498
                %v500 = vld [vmem:[%s494 + $0x20] sm:%s487]
                %501 = vst [vmem:[%s495 + $0x10] sm:%s487] %v500
                %v502 = vld [vmem:[%s494 + $0x30] sm:%s487]
                %503 = vst [vmem:[%s495 + $0x18] sm:%s487] %v502
                %v504 = vld [vmem:[%s494 + $0x40] sm:%s487]
                %505 = vst [vmem:[%s495 + $0x20] sm:%s487] %v504
                %v506 = vld [vmem:[%s494 + $0x50] sm:%s487]
                %507 = vst [vmem:[%s495 + $0x28] sm:%s487] %v506
                %v508 = vld [vmem:[%s494 + $0x60] sm:%s487]
                %509 = vst [vmem:[%s495 + $0x30] sm:%s487] %v508
                %v510 = vld [vmem:[%s494 + $0x70] sm:%s487]
                %511 = vst [vmem:[%s495 + $0x38] sm:%s487] %v510
              $region111: #{tpu_custom_call.1} parent=105 // loop_footer
                %s493 = sadd.s32 1, %s489
              $region112: #{tpu_custom_call.1} parent=105 // loop_footer_branch
                %488 = sbr.rel target = $region108
              $region113: #{tpu_custom_call.1} parent=105 // loop_exit
                _
            $region106: #{tpu_custom_call.1} parent=97 // pred_fallthru
              _
          $region98: #{tpu_custom_call.1} parent=93 // pred_fallthru
            _
          %540 = vnop
        $region94: #{tpu_custom_call.1} parent=47 // pred_fallthru
          _
      $region48: #{tpu_custom_call.1} parent=5 // pred_fallthru
        _
      %p541 = scmp.le.s32.totalorder 1, %s27
      %p542 = scmp.lt.s32.totalorder %s27, 3
      %p543 = pnand %p541, %p542
      %p544 = pneg %p543
      // Predicated region
      $region129: #{tpu_custom_call.1} parent=5 // pred_check
        _
      $region130: #{tpu_custom_call.1} parent=5 // pred_check_branch
        %546 = sbr.rel (%p543) target = $region132
      $region131: #{tpu_custom_call.1} parent=5 // pred_region
        %s547 = ssub.s32 %s27, 1
        %s548 = sand.u32 %s66, 1
        %s549 = sand.u32 %s66, 1
        %s550 = smul.addr %s549, 64
        %s551 = scalar_lea.vmem [#allocation3], %s550
        // Predicated region
        $region133: #{tpu_custom_call.1} parent=131 // pred_check
          %p552 = pneg %p79
        $region134: #{tpu_custom_call.1} parent=131 // pred_check_branch
          %554 = sbr.rel (%p552) target = $region136
        $region135: #{tpu_custom_call.1} parent=131 // pred_region
          _
        $region136: #{tpu_custom_call.1} parent=131 // pred_fallthru
          _
        %s555 = sand.u32 %s92, 1
        %s556 = sand.u32 %s92, 1
        %s557 = smul.addr %s556, 64
        %s558 = scalar_lea.vmem [#allocation4], %s557
        // Predicated region
        $region137: #{tpu_custom_call.1} parent=131 // pred_check
          %p559 = pneg %p105
        $region138: #{tpu_custom_call.1} parent=131 // pred_check_branch
          %561 = sbr.rel (%p559) target = $region140
        $region139: #{tpu_custom_call.1} parent=131 // pred_region
          _
        $region140: #{tpu_custom_call.1} parent=131 // pred_fallthru
          _
        %p562 = scmp.lt.s32.totalorder %s32, 1
        %s563 = scalar_select %p562, %s32, 1
        %s564 = smul.addr %s563, 8
        %s565 = scalar_lea.vmem %s0, %s564
        %p566 = pneg %p53
        %p567 = pneg %p50
        %s568 = sand.u32 %s66, 1
        %s569 = sand.u32 %s66, 1
        %s570 = smul.addr %s569, 64
        %s571 = scalar_lea.vmem [#allocation3], %s570
        %p572 = pneg %p79
        %p573 = pneg %p76
        %s574 = sand.u32 %s92, 1
        %s575 = sand.u32 %s92, 1
        %s576 = smul.addr %s575, 64
        %s577 = scalar_lea.vmem [#allocation4], %s576
        %p578 = pneg %p105
        %p579 = pneg %p102
        %p580 = pneg %p126
        %p581 = pneg %p123
        %p582 = pneg %p147
        %p583 = pneg %p144
        %p584 = pneg %p168
        %p585 = pneg %p165
        %p586 = pneg %p189
        %p587 = pneg %p186
        %p588 = pneg %p210
        %p589 = pneg %p207
        %p590 = pneg %p231
        %p591 = pneg %p228
        %p592 = pneg %p252
        %p593 = pneg %p249
        %p594 = pneg %p273
        %p595 = pneg %p270
        %p596 = pneg %p299
        %p597 = pneg %p296
        %s598 = sand.u32 %s286, 1
        %s599 = scalar_lea.sflag [#allocation6], %s598
        %s600 = sand.u32 %s286, 1
        %s601 = scalar_lea.vmem [#allocation5], %s600
        %p602 = pneg %p325
        %p603 = pneg %p322
        %s604 = sand.u32 %s32, 1
        %s605 = scalar_lea.sflag [#allocation8], %s604
        %s606 = sand.u32 %s312, 1
        %s607 = smul.addr %s606, 64
        %s608 = scalar_lea.vmem [#allocation7], %s607
        %p609 = pneg %p351
        %p610 = pneg %p348
        %s611 = sand.u32 %s32, 1
        %s612 = scalar_lea.sflag [#allocation8], %s611
        %s613 = sand.u32 %s338, 1
        %s614 = smul.addr %s613, 64
        %s615 = scalar_lea.vmem [#allocation9], %s614
        %p616 = scmp.lt.s32.totalorder %s32, 1
        %s617 = scalar_select %p616, %s32, 1
        %s618 = smul.addr %s617, 8
        %s619 = scalar_lea.vmem %s0, %s618
        %v620 = vld [vmem:[%s619] sm:$0x1f]
        %v621 = vld [vmem:[%s551] sm:$0xff]
        %v622 = vld [vmem:[%s551 + $0x8] sm:$0xff]
        %v623 = vld [vmem:[%s551 + $0x10] sm:$0xff]
        %v624 = vld [vmem:[%s551 + $0x18] sm:$0xff]
        %v625 = vld [vmem:[%s558] sm:$0xff]
        %v626 = vld [vmem:[%s558 + $0x8] sm:$0xff]
        %v627 = vld [vmem:[%s558 + $0x10] sm:$0xff]
        %v628 = vld [vmem:[%s558 + $0x18] sm:$0xff]
        %v629 = vld [vmem:[%s3] sm:$0xff]
        %v630 = vld [vmem:[%s3 + $0x8] sm:$0xff]
        %v631 = vld [vmem:[%s3 + $0x10] sm:$0xff]
        %v632 = vld [vmem:[%s3 + $0x18] sm:$0xff]
        %v633 = vld [vmem:[%s3 + $0x20] sm:$0xff]
        %v634 = vld [vmem:[%s3 + $0x28] sm:$0xff]
        %v635 = vld [vmem:[%s3 + $0x30] sm:$0xff]
        %v636 = vld [vmem:[%s3 + $0x38] sm:$0xff]
        %v637 = vld [vmem:[%s3 + $0x40] sm:$0xff]
        %v638 = vld [vmem:[%s3 + $0x48] sm:$0xff]
        %v639 = vld [vmem:[%s3 + $0x50] sm:$0xff]
        %v640 = vld [vmem:[%s3 + $0x58] sm:$0xff]
        %v641 = vld [vmem:[%s3 + $0x60] sm:$0xff]
        %v642 = vld [vmem:[%s3 + $0x68] sm:$0xff]
        %v643 = vld [vmem:[%s3 + $0x70] sm:$0xff]
        %v644 = vld [vmem:[%s3 + $0x78] sm:$0xff]
        %v645 = vld [vmem:[%s4] sm:$0xff]
        %v646 = vld [vmem:[%s4 + $0x8] sm:$0xff]
        %v647 = vld [vmem:[%s4 + $0x10] sm:$0xff]
        %v648 = vld [vmem:[%s4 + $0x18] sm:$0xff]
        %v649 = vld [vmem:[%s4 + $0x20] sm:$0xff]
        %v650 = vld [vmem:[%s4 + $0x28] sm:$0xff]
        %v651 = vld [vmem:[%s4 + $0x30] sm:$0xff]
        %v652 = vld [vmem:[%s4 + $0x38] sm:$0xff]
        %v653 = vld [vmem:[%s4 + $0x40] sm:$0xff]
        %v654 = vld [vmem:[%s4 + $0x48] sm:$0xff]
        %v655 = vld [vmem:[%s4 + $0x50] sm:$0xff]
        %v656 = vld [vmem:[%s4 + $0x58] sm:$0xff]
        %v657 = vld [vmem:[%s4 + $0x60] sm:$0xff]
        %v658 = vld [vmem:[%s4 + $0x68] sm:$0xff]
        %v659 = vld [vmem:[%s4 + $0x70] sm:$0xff]
        %v660 = vld [vmem:[%s4 + $0x78] sm:$0xff]
        %vm661 = vcmask 261120
        %v663 = vsel %vm661, %v645, 0
        %v666 = vsel %vm661, %v646, 0
        %v669 = vsel %vm661, %v647, 0
        %v672 = vsel %vm661, %v648, 0
        %v675 = vsel %vm661, %v649, 0
        %v678 = vsel %vm661, %v650, 0
        %v681 = vsel %vm661, %v651, 0
        %v684 = vsel %vm661, %v652, 0
        %v687 = vsel %vm661, %v653, 0
        %v690 = vsel %vm661, %v654, 0
        %v693 = vsel %vm661, %v655, 0
        %v696 = vsel %vm661, %v656, 0
        %v699 = vsel %vm661, %v657, 0
        %v702 = vsel %vm661, %v658, 0
        %v705 = vsel %vm661, %v659, 0
        %v708 = vsel %vm661, %v660, 0
        %710 = vmatpush.msra.mxu0 0.0
        %711 = vmatpush.msra.mxu0 0.0
        %712 = vmatpush.msra.mxu0 0.0
        %713 = vmatpush.msra.mxu0 0.0
        %714 = vmatpush.msra.mxu0 0.0
        %715 = vmatpush.msra.mxu0 0.0
        %716 = vmatpush.msra.mxu0 0.0
        %717 = vmatpush.msra.mxu0 0.0
        %718 = vmatpush.msra.mxu0 0.0
        %719 = vmatpush.msra.mxu0 0.0
        %720 = vmatpush.msra.mxu0 0.0
        %721 = vmatpush.msra.mxu0 0.0
        %722 = vmatpush.msra.mxu0 %v624
        %723 = vmatpush.msra.mxu0 %v623
        %724 = vmatpush.msra.mxu0 %v622
        %725 = vmatpush.msra.mxu0 %v621
        %726 = vmatmul.f32.gmra.mxu0 %v663
        %v727 = vpop.f32.mrf.mxu0
        %v728 = vadd.f32 0.0, %v727
        %729 = vmatmul.f32.gmra.mxu0 %v666
        %v730 = vpop.f32.mrf.mxu0
        %v731 = vadd.f32 0.0, %v730
        %732 = vmatmul.f32.gmra.mxu0 %v669
        %v733 = vpop.f32.mrf.mxu0
        %v734 = vadd.f32 0.0, %v733
        %735 = vmatmul.f32.gmra.mxu0 %v672
        %v736 = vpop.f32.mrf.mxu0
        %v737 = vadd.f32 0.0, %v736
        %738 = vmatmul.f32.gmra.mxu0 %v675
        %v739 = vpop.f32.mrf.mxu0
        %v740 = vadd.f32 0.0, %v739
        %741 = vmatmul.f32.gmra.mxu0 %v678
        %v742 = vpop.f32.mrf.mxu0
        %v743 = vadd.f32 0.0, %v742
        %744 = vmatmul.f32.gmra.mxu0 %v681
        %v745 = vpop.f32.mrf.mxu0
        %v746 = vadd.f32 0.0, %v745
        %747 = vmatmul.f32.gmra.mxu0 %v684
        %v748 = vpop.f32.mrf.mxu0
        %v749 = vadd.f32 0.0, %v748
        %750 = vmatmul.f32.gmra.mxu0 %v687
        %v751 = vpop.f32.mrf.mxu0
        %v752 = vadd.f32 0.0, %v751
        %753 = vmatmul.f32.gmra.mxu0 %v690
        %v754 = vpop.f32.mrf.mxu0
        %v755 = vadd.f32 0.0, %v754
        %756 = vmatmul.f32.gmra.mxu0 %v693
        %v757 = vpop.f32.mrf.mxu0
        %v758 = vadd.f32 0.0, %v757
        %759 = vmatmul.f32.gmra.mxu0 %v696
        %v760 = vpop.f32.mrf.mxu0
        %v761 = vadd.f32 0.0, %v760
        %762 = vmatmul.f32.gmra.mxu0 %v699
        %v763 = vpop.f32.mrf.mxu0
        %v764 = vadd.f32 0.0, %v763
        %765 = vmatmul.f32.gmra.mxu0 %v702
        %v766 = vpop.f32.mrf.mxu0
        %v767 = vadd.f32 0.0, %v766
        %768 = vmatmul.f32.gmra.mxu0 %v705
        %v769 = vpop.f32.mrf.mxu0
        %v770 = vadd.f32 0.0, %v769
        %771 = vmatmul.f32.gmra.mxu0 %v708
        %v772 = vpop.f32.mrf.mxu0
        %v773 = vadd.f32 0.0, %v772
        %774 = vdwg.mxu0
        %vm775 = vcmask 39936
        %v777 = vsel %vm775, %v629, 0
        %v780 = vsel %vm775, %v630, 0
        %v783 = vsel %vm775, %v631, 0
        %v786 = vsel %vm775, %v632, 0
        %v789 = vsel %vm775, %v633, 0
        %v792 = vsel %vm775, %v634, 0
        %v795 = vsel %vm775, %v635, 0
        %v798 = vsel %vm775, %v636, 0
        %v801 = vsel %vm775, %v637, 0
        %v804 = vsel %vm775, %v638, 0
        %v807 = vsel %vm775, %v639, 0
        %v810 = vsel %vm775, %v640, 0
        %v813 = vsel %vm775, %v641, 0
        %v816 = vsel %vm775, %v642, 0
        %v819 = vsel %vm775, %v643, 0
        %v822 = vsel %vm775, %v644, 0
        %vm824 = vcmask 1044480
        %v826 = vsel %vm824, %v620, 0
        %828 = vmatpush.msra.mxu0 0.0
        %829 = vmatpush.msra.mxu0 0.0
        %830 = vmatpush.msra.mxu0 0.0
        %831 = vmatpush.msra.mxu0 0.0
        %832 = vmatpush.msra.mxu0 0.0
        %833 = vmatpush.msra.mxu0 0.0
        %834 = vmatpush.msra.mxu0 0.0
        %835 = vmatpush.msra.mxu0 0.0
        %836 = vmatpush.msra.mxu0 0.0
        %837 = vmatpush.msra.mxu0 0.0
        %838 = vmatpush.msra.mxu0 0.0
        %839 = vmatpush.msra.mxu0 0.0
        %840 = vmatpush.msra.mxu0 0.0
        %841 = vmatpush.msra.mxu0 0.0
        %842 = vmatpush.msra.mxu0 0.0
        %843 = vmatpush.msra.mxu0 %v826
        %844 = vmatmul.f32.gmra.mxu0 %v777
        %v845 = vpop.f32.mrf.mxu0
        %v846 = vadd.f32 %v728, %v845
        %847 = vmatmul.f32.gmra.mxu0 %v780
        %v848 = vpop.f32.mrf.mxu0
        %v849 = vadd.f32 %v731, %v848
        %850 = vmatmul.f32.gmra.mxu0 %v783
        %v851 = vpop.f32.mrf.mxu0
        %v852 = vadd.f32 %v734, %v851
        %853 = vmatmul.f32.gmra.mxu0 %v786
        %v854 = vpop.f32.mrf.mxu0
        %v855 = vadd.f32 %v737, %v854
        %856 = vmatmul.f32.gmra.mxu0 %v789
        %v857 = vpop.f32.mrf.mxu0
        %v858 = vadd.f32 %v740, %v857
        %859 = vmatmul.f32.gmra.mxu0 %v792
        %v860 = vpop.f32.mrf.mxu0
        %v861 = vadd.f32 %v743, %v860
        %862 = vmatmul.f32.gmra.mxu0 %v795
        %v863 = vpop.f32.mrf.mxu0
        %v864 = vadd.f32 %v746, %v863
        %865 = vmatmul.f32.gmra.mxu0 %v798
        %v866 = vpop.f32.mrf.mxu0
        %v867 = vadd.f32 %v749, %v866
        %868 = vmatmul.f32.gmra.mxu0 %v801
        %v869 = vpop.f32.mrf.mxu0
        %v870 = vadd.f32 %v752, %v869
        %871 = vmatmul.f32.gmra.mxu0 %v804
        %v872 = vpop.f32.mrf.mxu0
        %v873 = vadd.f32 %v755, %v872
        %874 = vmatmul.f32.gmra.mxu0 %v807
        %v875 = vpop.f32.mrf.mxu0
        %v876 = vadd.f32 %v758, %v875
        %877 = vmatmul.f32.gmra.mxu0 %v810
        %v878 = vpop.f32.mrf.mxu0
        %v879 = vadd.f32 %v761, %v878
        %880 = vmatmul.f32.gmra.mxu0 %v813
        %v881 = vpop.f32.mrf.mxu0
        %v882 = vadd.f32 %v764, %v881
        %883 = vmatmul.f32.gmra.mxu0 %v816
        %v884 = vpop.f32.mrf.mxu0
        %v885 = vadd.f32 %v767, %v884
        %886 = vmatmul.f32.gmra.mxu0 %v819
        %v887 = vpop.f32.mrf.mxu0
        %v888 = vadd.f32 %v770, %v887
        %889 = vmatmul.f32.gmra.mxu0 %v822
        %v890 = vpop.f32.mrf.mxu0
        %v891 = vadd.f32 %v773, %v890
        %892 = vdwg.mxu0
        %v893 = vld [vmem:[%s5] sm:$0xff]
        %v894 = vld [vmem:[%s5 + $0x8] sm:$0xff]
        %v895 = vld [vmem:[%s5 + $0x10] sm:$0xff]
        %v896 = vld [vmem:[%s5 + $0x18] sm:$0xff]
        %v897 = vld [vmem:[%s5 + $0x20] sm:$0xff]
        %v898 = vld [vmem:[%s5 + $0x28] sm:$0xff]
        %v899 = vld [vmem:[%s5 + $0x30] sm:$0xff]
        %v900 = vld [vmem:[%s5 + $0x38] sm:$0xff]
        %v901 = vld [vmem:[%s5 + $0x40] sm:$0xff]
        %v902 = vld [vmem:[%s5 + $0x48] sm:$0xff]
        %v903 = vld [vmem:[%s5 + $0x50] sm:$0xff]
        %v904 = vld [vmem:[%s5 + $0x58] sm:$0xff]
        %v905 = vld [vmem:[%s5 + $0x60] sm:$0xff]
        %v906 = vld [vmem:[%s5 + $0x68] sm:$0xff]
        %v907 = vld [vmem:[%s5 + $0x70] sm:$0xff]
        %v908 = vld [vmem:[%s5 + $0x78] sm:$0xff]
        %910 = vset.pattern.permute.xlu0 0
        %911 = vperm.xlu0 %910, %v893
        %v912 = vpop.permute.xlu0 %911
        %915 = vset.pattern.permute.xlu0 0
        %916 = vperm.xlu0 %915, %v894
        %v917 = vpop.permute.xlu0 %916
        %920 = vset.pattern.permute.xlu0 0
        %921 = vperm.xlu0 %920, %v895
        %v922 = vpop.permute.xlu0 %921
        %925 = vset.pattern.permute.xlu0 0
        %926 = vperm.xlu0 %925, %v896
        %v927 = vpop.permute.xlu0 %926
        %930 = vset.pattern.permute.xlu0 0
        %931 = vperm.xlu0 %930, %v897
        %v932 = vpop.permute.xlu0 %931
        %935 = vset.pattern.permute.xlu0 0
        %936 = vperm.xlu0 %935, %v898
        %v937 = vpop.permute.xlu0 %936
        %940 = vset.pattern.permute.xlu0 0
        %941 = vperm.xlu0 %940, %v899
        %v942 = vpop.permute.xlu0 %941
        %945 = vset.pattern.permute.xlu0 0
        %946 = vperm.xlu0 %945, %v900
        %v947 = vpop.permute.xlu0 %946
        %950 = vset.pattern.permute.xlu0 0
        %951 = vperm.xlu0 %950, %v901
        %v952 = vpop.permute.xlu0 %951
        %955 = vset.pattern.permute.xlu0 0
        %956 = vperm.xlu0 %955, %v902
        %v957 = vpop.permute.xlu0 %956
        %960 = vset.pattern.permute.xlu0 0
        %961 = vperm.xlu0 %960, %v903
        %v962 = vpop.permute.xlu0 %961
        %965 = vset.pattern.permute.xlu0 0
        %966 = vperm.xlu0 %965, %v904
        %v967 = vpop.permute.xlu0 %966
        %970 = vset.pattern.permute.xlu0 0
        %971 = vperm.xlu0 %970, %v905
        %v972 = vpop.permute.xlu0 %971
        %975 = vset.pattern.permute.xlu0 0
        %976 = vperm.xlu0 %975, %v906
        %v977 = vpop.permute.xlu0 %976
        %980 = vset.pattern.permute.xlu0 0
        %981 = vperm.xlu0 %980, %v907
        %v982 = vpop.permute.xlu0 %981
        %985 = vset.pattern.permute.xlu0 0
        %986 = vperm.xlu0 %985, %v908
        %v987 = vpop.permute.xlu0 %986
        %v989 = vadd.f32 %v846, %v912
        %v990 = vadd.f32 %v849, %v917
        %v991 = vadd.f32 %v852, %v922
        %v992 = vadd.f32 %v855, %v927
        %v993 = vadd.f32 %v858, %v932
        %v994 = vadd.f32 %v861, %v937
        %v995 = vadd.f32 %v864, %v942
        %v996 = vadd.f32 %v867, %v947
        %v997 = vadd.f32 %v870, %v952
        %v998 = vadd.f32 %v873, %v957
        %v999 = vadd.f32 %v876, %v962
        %v1000 = vadd.f32 %v879, %v967
        %v1001 = vadd.f32 %v882, %v972
        %v1002 = vadd.f32 %v885, %v977
        %v1003 = vadd.f32 %v888, %v982
        %v1004 = vadd.f32 %v891, %v987
        %v1005 = vmul.f32 %v989, 0.5
        %v1006 = vmul.f32 %v990, 0.5
        %v1007 = vmul.f32 %v991, 0.5
        %v1008 = vmul.f32 %v992, 0.5
        %v1009 = vtanh.pop %v1005
        %v1010 = vtanh.pop %v1006
        %v1011 = vtanh.pop %v1007
        %v1012 = vtanh.pop %v1008
        %v1013 = vadd.f32 %v1009, 1.0
        %v1014 = vadd.f32 %v1010, 1.0
        %v1015 = vadd.f32 %v1011, 1.0
        %v1016 = vadd.f32 %v1012, 1.0
        %v1017 = vmul.f32 %v1013, 0.5
        %v1018 = vmul.f32 %v1014, 0.5
        %v1019 = vmul.f32 %v1015, 0.5
        %v1020 = vmul.f32 %v1016, 0.5
        %v1021 = vmul.f32 %v993, 0.5
        %v1022 = vmul.f32 %v994, 0.5
        %v1023 = vmul.f32 %v995, 0.5
        %v1024 = vmul.f32 %v996, 0.5
        %v1025 = vtanh.pop %v1021
        %v1026 = vtanh.pop %v1022
        %v1027 = vtanh.pop %v1023
        %v1028 = vtanh.pop %v1024
        %v1029 = vadd.f32 %v1025, 1.0
        %v1030 = vadd.f32 %v1026, 1.0
        %v1031 = vadd.f32 %v1027, 1.0
        %v1032 = vadd.f32 %v1028, 1.0
        %v1033 = vmul.f32 %v1029, 0.5
        %v1034 = vmul.f32 %v1030, 0.5
        %v1035 = vmul.f32 %v1031, 0.5
        %v1036 = vmul.f32 %v1032, 0.5
        %v1037 = vtanh.pop %v997
        %v1038 = vtanh.pop %v998
        %v1039 = vtanh.pop %v999
        %v1040 = vtanh.pop %v1000
        %v1041 = vmul.f32 %v1001, 0.5
        %v1042 = vmul.f32 %v1002, 0.5
        %v1043 = vmul.f32 %v1003, 0.5
        %v1044 = vmul.f32 %v1004, 0.5
        %v1045 = vtanh.pop %v1041
        %v1046 = vtanh.pop %v1042
        %v1047 = vtanh.pop %v1043
        %v1048 = vtanh.pop %v1044
        %v1049 = vadd.f32 %v1045, 1.0
        %v1050 = vadd.f32 %v1046, 1.0
        %v1051 = vadd.f32 %v1047, 1.0
        %v1052 = vadd.f32 %v1048, 1.0
        %v1053 = vmul.f32 %v1049, 0.5
        %v1054 = vmul.f32 %v1050, 0.5
        %v1055 = vmul.f32 %v1051, 0.5
        %v1056 = vmul.f32 %v1052, 0.5
        %v1057 = vmul.f32 %v1033, %v625
        %v1058 = vmul.f32 %v1034, %v626
        %v1059 = vmul.f32 %v1035, %v627
        %v1060 = vmul.f32 %v1036, %v628
        %v1061 = vmul.f32 %v1017, %v1037
        %v1062 = vmul.f32 %v1018, %v1038
        %v1063 = vmul.f32 %v1019, %v1039
        %v1064 = vmul.f32 %v1020, %v1040
        %v1065 = vadd.f32 %v1057, %v1061
        %v1066 = vadd.f32 %v1058, %v1062
        %v1067 = vadd.f32 %v1059, %v1063
        %v1068 = vadd.f32 %v1060, %v1064
        %v1069 = vtanh.pop %v1065
        %v1070 = vtanh.pop %v1066
        %v1071 = vtanh.pop %v1067
        %v1072 = vtanh.pop %v1068
        %v1073 = vmul.f32 %v1053, %v1069
        %v1074 = vmul.f32 %v1054, %v1070
        %v1075 = vmul.f32 %v1055, %v1071
        %v1076 = vmul.f32 %v1056, %v1072
        %1077 = vst [vmem:[%s608] sm:$0xff] %v1073
        %1078 = vst [vmem:[%s608 + $0x8] sm:$0xff] %v1074
        %1079 = vst [vmem:[%s608 + $0x10] sm:$0xff] %v1075
        %1080 = vst [vmem:[%s608 + $0x18] sm:$0xff] %v1076
        %1081 = vst [vmem:[%s615] sm:$0xff] %v1065
        %1082 = vst [vmem:[%s615 + $0x8] sm:$0xff] %v1066
        %1083 = vst [vmem:[%s615 + $0x10] sm:$0xff] %v1067
        %1084 = vst [vmem:[%s615 + $0x18] sm:$0xff] %v1068
        %s1085 = scalar_lea.vmem %s551, 32 [#allocation3]
        %v1086 = vld [vmem:[%s1085] sm:$0xff]
        %v1087 = vld [vmem:[%s1085 + $0x8] sm:$0xff]
        %v1088 = vld [vmem:[%s1085 + $0x10] sm:$0xff]
        %v1089 = vld [vmem:[%s1085 + $0x18] sm:$0xff]
        %s1090 = scalar_lea.vmem %s558, 32 [#allocation4]
        %v1091 = vld [vmem:[%s1090] sm:$0xff]
        %v1092 = vld [vmem:[%s1090 + $0x8] sm:$0xff]
        %v1093 = vld [vmem:[%s1090 + $0x10] sm:$0xff]
        %v1094 = vld [vmem:[%s1090 + $0x18] sm:$0xff]
        %v1095 = vld [vmem:[%s6] sm:$0xff]
        %v1096 = vld [vmem:[%s6 + $0x8] sm:$0xff]
        %v1097 = vld [vmem:[%s6 + $0x10] sm:$0xff]
        %v1098 = vld [vmem:[%s6 + $0x18] sm:$0xff]
        %v1099 = vld [vmem:[%s6 + $0x20] sm:$0xff]
        %v1100 = vld [vmem:[%s6 + $0x28] sm:$0xff]
        %v1101 = vld [vmem:[%s6 + $0x30] sm:$0xff]
        %v1102 = vld [vmem:[%s6 + $0x38] sm:$0xff]
        %v1103 = vld [vmem:[%s6 + $0x40] sm:$0xff]
        %v1104 = vld [vmem:[%s6 + $0x48] sm:$0xff]
        %v1105 = vld [vmem:[%s6 + $0x50] sm:$0xff]
        %v1106 = vld [vmem:[%s6 + $0x58] sm:$0xff]
        %v1107 = vld [vmem:[%s6 + $0x60] sm:$0xff]
        %v1108 = vld [vmem:[%s6 + $0x68] sm:$0xff]
        %v1109 = vld [vmem:[%s6 + $0x70] sm:$0xff]
        %v1110 = vld [vmem:[%s6 + $0x78] sm:$0xff]
        %v1111 = vld [vmem:[%s7] sm:$0xff]
        %v1112 = vld [vmem:[%s7 + $0x8] sm:$0xff]
        %v1113 = vld [vmem:[%s7 + $0x10] sm:$0xff]
        %v1114 = vld [vmem:[%s7 + $0x18] sm:$0xff]
        %v1115 = vld [vmem:[%s7 + $0x20] sm:$0xff]
        %v1116 = vld [vmem:[%s7 + $0x28] sm:$0xff]
        %v1117 = vld [vmem:[%s7 + $0x30] sm:$0xff]
        %v1118 = vld [vmem:[%s7 + $0x38] sm:$0xff]
        %v1119 = vld [vmem:[%s7 + $0x40] sm:$0xff]
        %v1120 = vld [vmem:[%s7 + $0x48] sm:$0xff]
        %v1121 = vld [vmem:[%s7 + $0x50] sm:$0xff]
        %v1122 = vld [vmem:[%s7 + $0x58] sm:$0xff]
        %v1123 = vld [vmem:[%s7 + $0x60] sm:$0xff]
        %v1124 = vld [vmem:[%s7 + $0x68] sm:$0xff]
        %v1125 = vld [vmem:[%s7 + $0x70] sm:$0xff]
        %v1126 = vld [vmem:[%s7 + $0x78] sm:$0xff]
        %v1128 = vsel %vm661, %v1111, 0
        %v1131 = vsel %vm661, %v1112, 0
        %v1134 = vsel %vm661, %v1113, 0
        %v1137 = vsel %vm661, %v1114, 0
        %v1140 = vsel %vm661, %v1115, 0
        %v1143 = vsel %vm661, %v1116, 0
        %v1146 = vsel %vm661, %v1117, 0
        %v1149 = vsel %vm661, %v1118, 0
        %v1152 = vsel %vm661, %v1119, 0
        %v1155 = vsel %vm661, %v1120, 0
        %v1158 = vsel %vm661, %v1121, 0
        %v1161 = vsel %vm661, %v1122, 0
        %v1164 = vsel %vm661, %v1123, 0
        %v1167 = vsel %vm661, %v1124, 0
        %v1170 = vsel %vm661, %v1125, 0
        %v1173 = vsel %vm661, %v1126, 0
        %1175 = vmatpush.msra.mxu0 0.0
        %1176 = vmatpush.msra.mxu0 0.0
        %1177 = vmatpush.msra.mxu0 0.0
        %1178 = vmatpush.msra.mxu0 0.0
        %1179 = vmatpush.msra.mxu0 0.0
        %1180 = vmatpush.msra.mxu0 0.0
        %1181 = vmatpush.msra.mxu0 0.0
        %1182 = vmatpush.msra.mxu0 0.0
        %1183 = vmatpush.msra.mxu0 0.0
        %1184 = vmatpush.msra.mxu0 0.0
        %1185 = vmatpush.msra.mxu0 0.0
        %1186 = vmatpush.msra.mxu0 0.0
        %1187 = vmatpush.msra.mxu0 %v1089
        %1188 = vmatpush.msra.mxu0 %v1088
        %1189 = vmatpush.msra.mxu0 %v1087
        %1190 = vmatpush.msra.mxu0 %v1086
        %1191 = vmatmul.f32.gmra.mxu0 %v1128
        %v1192 = vpop.f32.mrf.mxu0
        %v1193 = vadd.f32 0.0, %v1192
        %1194 = vmatmul.f32.gmra.mxu0 %v1131
        %v1195 = vpop.f32.mrf.mxu0
        %v1196 = vadd.f32 0.0, %v1195
        %1197 = vmatmul.f32.gmra.mxu0 %v1134
        %v1198 = vpop.f32.mrf.mxu0
        %v1199 = vadd.f32 0.0, %v1198
        %1200 = vmatmul.f32.gmra.mxu0 %v1137
        %v1201 = vpop.f32.mrf.mxu0
        %v1202 = vadd.f32 0.0, %v1201
        %1203 = vmatmul.f32.gmra.mxu0 %v1140
        %v1204 = vpop.f32.mrf.mxu0
        %v1205 = vadd.f32 0.0, %v1204
        %1206 = vmatmul.f32.gmra.mxu0 %v1143
        %v1207 = vpop.f32.mrf.mxu0
        %v1208 = vadd.f32 0.0, %v1207
        %1209 = vmatmul.f32.gmra.mxu0 %v1146
        %v1210 = vpop.f32.mrf.mxu0
        %v1211 = vadd.f32 0.0, %v1210
        %1212 = vmatmul.f32.gmra.mxu0 %v1149
        %v1213 = vpop.f32.mrf.mxu0
        %v1214 = vadd.f32 0.0, %v1213
        %1215 = vmatmul.f32.gmra.mxu0 %v1152
        %v1216 = vpop.f32.mrf.mxu0
        %v1217 = vadd.f32 0.0, %v1216
        %1218 = vmatmul.f32.gmra.mxu0 %v1155
        %v1219 = vpop.f32.mrf.mxu0
        %v1220 = vadd.f32 0.0, %v1219
        %1221 = vmatmul.f32.gmra.mxu0 %v1158
        %v1222 = vpop.f32.mrf.mxu0
        %v1223 = vadd.f32 0.0, %v1222
        %1224 = vmatmul.f32.gmra.mxu0 %v1161
        %v1225 = vpop.f32.mrf.mxu0
        %v1226 = vadd.f32 0.0, %v1225
        %1227 = vmatmul.f32.gmra.mxu0 %v1164
        %v1228 = vpop.f32.mrf.mxu0
        %v1229 = vadd.f32 0.0, %v1228
        %1230 = vmatmul.f32.gmra.mxu0 %v1167
        %v1231 = vpop.f32.mrf.mxu0
        %v1232 = vadd.f32 0.0, %v1231
        %1233 = vmatmul.f32.gmra.mxu0 %v1170
        %v1234 = vpop.f32.mrf.mxu0
        %v1235 = vadd.f32 0.0, %v1234
        %1236 = vmatmul.f32.gmra.mxu0 %v1173
        %v1237 = vpop.f32.mrf.mxu0
        %v1238 = vadd.f32 0.0, %v1237
        %1239 = vdwg.mxu0
        %v1241 = vsel %vm661, %v1095, 0
        %v1244 = vsel %vm661, %v1096, 0
        %v1247 = vsel %vm661, %v1097, 0
        %v1250 = vsel %vm661, %v1098, 0
        %v1253 = vsel %vm661, %v1099, 0
        %v1256 = vsel %vm661, %v1100, 0
        %v1259 = vsel %vm661, %v1101, 0
        %v1262 = vsel %vm661, %v1102, 0
        %v1265 = vsel %vm661, %v1103, 0
        %v1268 = vsel %vm661, %v1104, 0
        %v1271 = vsel %vm661, %v1105, 0
        %v1274 = vsel %vm661, %v1106, 0
        %v1277 = vsel %vm661, %v1107, 0
        %v1280 = vsel %vm661, %v1108, 0
        %v1283 = vsel %vm661, %v1109, 0
        %v1286 = vsel %vm661, %v1110, 0
        %1288 = vmatpush.msra.mxu0 0.0
        %1289 = vmatpush.msra.mxu0 0.0
        %1290 = vmatpush.msra.mxu0 0.0
        %1291 = vmatpush.msra.mxu0 0.0
        %1292 = vmatpush.msra.mxu0 0.0
        %1293 = vmatpush.msra.mxu0 0.0
        %1294 = vmatpush.msra.mxu0 0.0
        %1295 = vmatpush.msra.mxu0 0.0
        %1296 = vmatpush.msra.mxu0 0.0
        %1297 = vmatpush.msra.mxu0 0.0
        %1298 = vmatpush.msra.mxu0 0.0
        %1299 = vmatpush.msra.mxu0 0.0
        %1300 = vmatpush.msra.mxu0 %v1076
        %1301 = vmatpush.msra.mxu0 %v1075
        %1302 = vmatpush.msra.mxu0 %v1074
        %1303 = vmatpush.msra.mxu0 %v1073
        %1304 = vmatmul.f32.gmra.mxu0 %v1241
        %v1305 = vpop.f32.mrf.mxu0
        %v1306 = vadd.f32 %v1193, %v1305
        %1307 = vmatmul.f32.gmra.mxu0 %v1244
        %v1308 = vpop.f32.mrf.mxu0
        %v1309 = vadd.f32 %v1196, %v1308
        %1310 = vmatmul.f32.gmra.mxu0 %v1247
        %v1311 = vpop.f32.mrf.mxu0
        %v1312 = vadd.f32 %v1199, %v1311
        %1313 = vmatmul.f32.gmra.mxu0 %v1250
        %v1314 = vpop.f32.mrf.mxu0
        %v1315 = vadd.f32 %v1202, %v1314
        %1316 = vmatmul.f32.gmra.mxu0 %v1253
        %v1317 = vpop.f32.mrf.mxu0
        %v1318 = vadd.f32 %v1205, %v1317
        %1319 = vmatmul.f32.gmra.mxu0 %v1256
        %v1320 = vpop.f32.mrf.mxu0
        %v1321 = vadd.f32 %v1208, %v1320
        %1322 = vmatmul.f32.gmra.mxu0 %v1259
        %v1323 = vpop.f32.mrf.mxu0
        %v1324 = vadd.f32 %v1211, %v1323
        %1325 = vmatmul.f32.gmra.mxu0 %v1262
        %v1326 = vpop.f32.mrf.mxu0
        %v1327 = vadd.f32 %v1214, %v1326
        %1328 = vmatmul.f32.gmra.mxu0 %v1265
        %v1329 = vpop.f32.mrf.mxu0
        %v1330 = vadd.f32 %v1217, %v1329
        %1331 = vmatmul.f32.gmra.mxu0 %v1268
        %v1332 = vpop.f32.mrf.mxu0
        %v1333 = vadd.f32 %v1220, %v1332
        %1334 = vmatmul.f32.gmra.mxu0 %v1271
        %v1335 = vpop.f32.mrf.mxu0
        %v1336 = vadd.f32 %v1223, %v1335
        %1337 = vmatmul.f32.gmra.mxu0 %v1274
        %v1338 = vpop.f32.mrf.mxu0
        %v1339 = vadd.f32 %v1226, %v1338
        %1340 = vmatmul.f32.gmra.mxu0 %v1277
        %v1341 = vpop.f32.mrf.mxu0
        %v1342 = vadd.f32 %v1229, %v1341
        %1343 = vmatmul.f32.gmra.mxu0 %v1280
        %v1344 = vpop.f32.mrf.mxu0
        %v1345 = vadd.f32 %v1232, %v1344
        %1346 = vmatmul.f32.gmra.mxu0 %v1283
        %v1347 = vpop.f32.mrf.mxu0
        %v1348 = vadd.f32 %v1235, %v1347
        %1349 = vmatmul.f32.gmra.mxu0 %v1286
        %v1350 = vpop.f32.mrf.mxu0
        %v1351 = vadd.f32 %v1238, %v1350
        %1352 = vdwg.mxu0
        %v1353 = vld [vmem:[%s8] sm:$0xff]
        %v1354 = vld [vmem:[%s8 + $0x8] sm:$0xff]
        %v1355 = vld [vmem:[%s8 + $0x10] sm:$0xff]
        %v1356 = vld [vmem:[%s8 + $0x18] sm:$0xff]
        %v1357 = vld [vmem:[%s8 + $0x20] sm:$0xff]
        %v1358 = vld [vmem:[%s8 + $0x28] sm:$0xff]
        %v1359 = vld [vmem:[%s8 + $0x30] sm:$0xff]
        %v1360 = vld [vmem:[%s8 + $0x38] sm:$0xff]
        %v1361 = vld [vmem:[%s8 + $0x40] sm:$0xff]
        %v1362 = vld [vmem:[%s8 + $0x48] sm:$0xff]
        %v1363 = vld [vmem:[%s8 + $0x50] sm:$0xff]
        %v1364 = vld [vmem:[%s8 + $0x58] sm:$0xff]
        %v1365 = vld [vmem:[%s8 + $0x60] sm:$0xff]
        %v1366 = vld [vmem:[%s8 + $0x68] sm:$0xff]
        %v1367 = vld [vmem:[%s8 + $0x70] sm:$0xff]
        %v1368 = vld [vmem:[%s8 + $0x78] sm:$0xff]
        %1370 = vset.pattern.permute.xlu0 0
        %1371 = vperm.xlu0 %1370, %v1353
        %v1372 = vpop.permute.xlu0 %1371
        %1375 = vset.pattern.permute.xlu0 0
        %1376 = vperm.xlu0 %1375, %v1354
        %v1377 = vpop.permute.xlu0 %1376
        %1380 = vset.pattern.permute.xlu0 0
        %1381 = vperm.xlu0 %1380, %v1355
        %v1382 = vpop.permute.xlu0 %1381
        %1385 = vset.pattern.permute.xlu0 0
        %1386 = vperm.xlu0 %1385, %v1356
        %v1387 = vpop.permute.xlu0 %1386
        %1390 = vset.pattern.permute.xlu0 0
        %1391 = vperm.xlu0 %1390, %v1357
        %v1392 = vpop.permute.xlu0 %1391
        %1395 = vset.pattern.permute.xlu0 0
        %1396 = vperm.xlu0 %1395, %v1358
        %v1397 = vpop.permute.xlu0 %1396
        %1400 = vset.pattern.permute.xlu0 0
        %1401 = vperm.xlu0 %1400, %v1359
        %v1402 = vpop.permute.xlu0 %1401
        %1405 = vset.pattern.permute.xlu0 0
        %1406 = vperm.xlu0 %1405, %v1360
        %v1407 = vpop.permute.xlu0 %1406
        %1410 = vset.pattern.permute.xlu0 0
        %1411 = vperm.xlu0 %1410, %v1361
        %v1412 = vpop.permute.xlu0 %1411
        %1415 = vset.pattern.permute.xlu0 0
        %1416 = vperm.xlu0 %1415, %v1362
        %v1417 = vpop.permute.xlu0 %1416
        %1420 = vset.pattern.permute.xlu0 0
        %1421 = vperm.xlu0 %1420, %v1363
        %v1422 = vpop.permute.xlu0 %1421
        %1425 = vset.pattern.permute.xlu0 0
        %1426 = vperm.xlu0 %1425, %v1364
        %v1427 = vpop.permute.xlu0 %1426
        %1430 = vset.pattern.permute.xlu0 0
        %1431 = vperm.xlu0 %1430, %v1365
        %v1432 = vpop.permute.xlu0 %1431
        %1435 = vset.pattern.permute.xlu0 0
        %1436 = vperm.xlu0 %1435, %v1366
        %v1437 = vpop.permute.xlu0 %1436
        %1440 = vset.pattern.permute.xlu0 0
        %1441 = vperm.xlu0 %1440, %v1367
        %v1442 = vpop.permute.xlu0 %1441
        %1445 = vset.pattern.permute.xlu0 0
        %1446 = vperm.xlu0 %1445, %v1368
        %v1447 = vpop.permute.xlu0 %1446
        %v1449 = vadd.f32 %v1306, %v1372
        %v1450 = vadd.f32 %v1309, %v1377
        %v1451 = vadd.f32 %v1312, %v1382
        %v1452 = vadd.f32 %v1315, %v1387
        %v1453 = vadd.f32 %v1318, %v1392
        %v1454 = vadd.f32 %v1321, %v1397
        %v1455 = vadd.f32 %v1324, %v1402
        %v1456 = vadd.f32 %v1327, %v1407
        %v1457 = vadd.f32 %v1330, %v1412
        %v1458 = vadd.f32 %v1333, %v1417
        %v1459 = vadd.f32 %v1336, %v1422
        %v1460 = vadd.f32 %v1339, %v1427
        %v1461 = vadd.f32 %v1342, %v1432
        %v1462 = vadd.f32 %v1345, %v1437
        %v1463 = vadd.f32 %v1348, %v1442
        %v1464 = vadd.f32 %v1351, %v1447
        %v1465 = vmul.f32 %v1449, 0.5
        %v1466 = vmul.f32 %v1450, 0.5
        %v1467 = vmul.f32 %v1451, 0.5
        %v1468 = vmul.f32 %v1452, 0.5
        %v1469 = vtanh.pop %v1465
        %v1470 = vtanh.pop %v1466
        %v1471 = vtanh.pop %v1467
        %v1472 = vtanh.pop %v1468
        %v1473 = vadd.f32 %v1469, 1.0
        %v1474 = vadd.f32 %v1470, 1.0
        %v1475 = vadd.f32 %v1471, 1.0
        %v1476 = vadd.f32 %v1472, 1.0
        %v1477 = vmul.f32 %v1473, 0.5
        %v1478 = vmul.f32 %v1474, 0.5
        %v1479 = vmul.f32 %v1475, 0.5
        %v1480 = vmul.f32 %v1476, 0.5
        %v1481 = vmul.f32 %v1453, 0.5
        %v1482 = vmul.f32 %v1454, 0.5
        %v1483 = vmul.f32 %v1455, 0.5
        %v1484 = vmul.f32 %v1456, 0.5
        %v1485 = vtanh.pop %v1481
        %v1486 = vtanh.pop %v1482
        %v1487 = vtanh.pop %v1483
        %v1488 = vtanh.pop %v1484
        %v1489 = vadd.f32 %v1485, 1.0
        %v1490 = vadd.f32 %v1486, 1.0
        %v1491 = vadd.f32 %v1487, 1.0
        %v1492 = vadd.f32 %v1488, 1.0
        %v1493 = vmul.f32 %v1489, 0.5
        %v1494 = vmul.f32 %v1490, 0.5
        %v1495 = vmul.f32 %v1491, 0.5
        %v1496 = vmul.f32 %v1492, 0.5
        %v1497 = vtanh.pop %v1457
        %v1498 = vtanh.pop %v1458
        %v1499 = vtanh.pop %v1459
        %v1500 = vtanh.pop %v1460
        %v1501 = vmul.f32 %v1461, 0.5
        %v1502 = vmul.f32 %v1462, 0.5
        %v1503 = vmul.f32 %v1463, 0.5
        %v1504 = vmul.f32 %v1464, 0.5
        %v1505 = vtanh.pop %v1501
        %v1506 = vtanh.pop %v1502
        %v1507 = vtanh.pop %v1503
        %v1508 = vtanh.pop %v1504
        %v1509 = vadd.f32 %v1505, 1.0
        %v1510 = vadd.f32 %v1506, 1.0
        %v1511 = vadd.f32 %v1507, 1.0
        %v1512 = vadd.f32 %v1508, 1.0
        %v1513 = vmul.f32 %v1509, 0.5
        %v1514 = vmul.f32 %v1510, 0.5
        %v1515 = vmul.f32 %v1511, 0.5
        %v1516 = vmul.f32 %v1512, 0.5
        %v1517 = vmul.f32 %v1493, %v1091
        %v1518 = vmul.f32 %v1494, %v1092
        %v1519 = vmul.f32 %v1495, %v1093
        %v1520 = vmul.f32 %v1496, %v1094
        %v1521 = vmul.f32 %v1477, %v1497
        %v1522 = vmul.f32 %v1478, %v1498
        %v1523 = vmul.f32 %v1479, %v1499
        %v1524 = vmul.f32 %v1480, %v1500
        %v1525 = vadd.f32 %v1517, %v1521
        %v1526 = vadd.f32 %v1518, %v1522
        %v1527 = vadd.f32 %v1519, %v1523
        %v1528 = vadd.f32 %v1520, %v1524
        %v1529 = vtanh.pop %v1525
        %v1530 = vtanh.pop %v1526
        %v1531 = vtanh.pop %v1527
        %v1532 = vtanh.pop %v1528
        %v1533 = vmul.f32 %v1513, %v1529
        %v1534 = vmul.f32 %v1514, %v1530
        %v1535 = vmul.f32 %v1515, %v1531
        %v1536 = vmul.f32 %v1516, %v1532
        %s1537 = scalar_lea.vmem %s608, 32 [#allocation7]
        %1538 = vst [vmem:[%s1537] sm:$0xff] %v1533
        %1539 = vst [vmem:[%s1537 + $0x8] sm:$0xff] %v1534
        %1540 = vst [vmem:[%s1537 + $0x10] sm:$0xff] %v1535
        %1541 = vst [vmem:[%s1537 + $0x18] sm:$0xff] %v1536
        %s1542 = scalar_lea.vmem %s615, 32 [#allocation9]
        %1543 = vst [vmem:[%s1542] sm:$0xff] %v1525
        %1544 = vst [vmem:[%s1542 + $0x8] sm:$0xff] %v1526
        %1545 = vst [vmem:[%s1542 + $0x10] sm:$0xff] %v1527
        %1546 = vst [vmem:[%s1542 + $0x18] sm:$0xff] %v1528
        %v1547 = vld [vmem:[%s9] sm:$0xff]
        %v1548 = vld [vmem:[%s9 + $0x8] sm:$0xff]
        %v1549 = vld [vmem:[%s9 + $0x10] sm:$0xff]
        %v1550 = vld [vmem:[%s9 + $0x18] sm:$0xff]
        %1552 = vset.pattern.permute.xlu0 0
        %1553 = vperm.xlu0 %1552, %v1547
        %v1554 = vpop.permute.xlu0 %1553
        %1557 = vset.pattern.permute.xlu0 0
        %1558 = vperm.xlu0 %1557, %v1548
        %v1559 = vpop.permute.xlu0 %1558
        %1562 = vset.pattern.permute.xlu0 0
        %1563 = vperm.xlu0 %1562, %v1549
        %v1564 = vpop.permute.xlu0 %1563
        %1567 = vset.pattern.permute.xlu0 0
        %1568 = vperm.xlu0 %1567, %v1550
        %v1569 = vpop.permute.xlu0 %1568
        %v1571 = vmul.f32 %v1554, %v1533
        %v1572 = vmul.f32 %v1559, %v1534
        %v1573 = vmul.f32 %v1564, %v1535
        %v1574 = vmul.f32 %v1569, %v1536
        %v1575 = vadd.f32 %v1571, %v1572
        %v1576 = vadd.f32 %v1575, %v1573
        %v1577 = vadd.f32 %v1576, %v1574
        %v1578 = vrot.slane %v1577, 4
        %v1579 = vadd.f32 %v1577, %v1578
        %v1580 = vrot.slane %v1579, 2
        %v1581 = vadd.f32 %v1579, %v1580
        %v1582 = vrot.slane %v1581, 1
        %v1583 = vadd.f32 %v1581, %v1582
        %s1584 = sld [smem:[#allocation2]]
        %v1585 = vstv %s1584
        %v1586 = vadd.f32 %v1583, %v1585
        %v1587 = vmul.f32 %v1586, 0.5
        %v1588 = vtanh.pop %v1587
        %v1589 = vadd.f32 %v1588, 1.0
        %v1590 = vmul.f32 %v1589, 0.5
        %1591 = vst [vmem:[%s601] sm:$0x1] %v1590
        %s1592 = sand.u32 %s286, 1
        %s1593 = scalar_lea.sflag [#allocation6], %s1592
        %s1594 = sand.u32 %s286, 1
        %s1595 = scalar_lea.vmem [#allocation5], %s1594
        %s1596 = sand.u32 %s32, 1
        %s1597 = scalar_lea.sflag [#allocation8], %s1596
        %s1598 = sand.u32 %s312, 1
        %s1599 = smul.addr %s1598, 64
        %s1600 = scalar_lea.vmem [#allocation7], %s1599
        %s1601 = sand.u32 %s32, 1
        %s1602 = scalar_lea.sflag [#allocation8], %s1601
        %s1603 = sand.u32 %s338, 1
        %s1604 = smul.addr %s1603, 64
        %s1605 = scalar_lea.vmem [#allocation9], %s1604
        // Predicated region
        $region141: #{tpu_custom_call.1} parent=131 // pred_check
          %p1606 = pneg %p296
        $region142: #{tpu_custom_call.1} parent=131 // pred_check_branch
          %1608 = sbr.rel (%p1606) target = $region144
        $region143: #{tpu_custom_call.1} parent=131 // pred_region
          %1610 = vsyncadd %s1593, 0
          %s1611 = scalar_lea.hbm %s11, %s32
          %s1613 = sshll.u32 %s1595, 4
          %s1614 = int_to_ptr.vmem [resolvable:$true] %s1613
          %s1615 = sshll.u32 %s1611, 4
          %s1616 = int_to_ptr.hbm [resolvable:$true] %s1615
          %1618 = dma.vmem_to_hbm [thread:$0]  %s1614, 16, %s1616, %s1593
        $region144: #{tpu_custom_call.1} parent=131 // pred_fallthru
          _
        // Predicated region
        $region145: #{tpu_custom_call.1} parent=131 // pred_check
          %p1619 = pneg %p322
        $region146: #{tpu_custom_call.1} parent=131 // pred_check_branch
          %1621 = sbr.rel (%p1619) target = $region148
        $region147: #{tpu_custom_call.1} parent=131 // pred_region
          %1623 = vsyncadd %s1597, 0
          %s1624 = smul.addr %s32, 8
          %s1625 = scalar_lea.hbm %s12, %s1624
          %s1626 = sshll.u32 %s1600, 4
          %s1627 = int_to_ptr.vmem [resolvable:$true] %s1626
          %s1628 = sshll.u32 %s1625, 4
          %s1629 = int_to_ptr.hbm [resolvable:$true] %s1628
          %1634 = dma.vmem_to_hbm [thread:$0]  %s1627, 1024, %s1629, %s1597, 128, 256, 8
        $region148: #{tpu_custom_call.1} parent=131 // pred_fallthru
          _
        // Predicated region
        $region149: #{tpu_custom_call.1} parent=131 // pred_check
          %p1635 = pneg %p348
        $region150: #{tpu_custom_call.1} parent=131 // pred_check_branch
          %1637 = sbr.rel (%p1635) target = $region152
        $region151: #{tpu_custom_call.1} parent=131 // pred_region
          %1639 = vsyncadd %s1602, 0
          %s1640 = smul.addr %s32, 8
          %s1641 = scalar_lea.hbm %s13, %s1640
          %s1642 = sshll.u32 %s1605, 4
          %s1643 = int_to_ptr.vmem [resolvable:$true] %s1642
          %s1644 = sshll.u32 %s1641, 4
          %s1645 = int_to_ptr.hbm [resolvable:$true] %s1644
          %1650 = dma.vmem_to_hbm [thread:$0]  %s1643, 1024, %s1645, %s1602, 128, 256, 8
        $region152: #{tpu_custom_call.1} parent=131 // pred_fallthru
          _
      $region132: #{tpu_custom_call.1} parent=5 // pred_fallthru
        _
      %p1651 = scmp.le.s32.totalorder 2, %s27
      // Predicated region
      $region153: #{tpu_custom_call.1} parent=5 // pred_check
        %p1652 = pneg %p1651
      $region154: #{tpu_custom_call.1} parent=5 // pred_check_branch
        %1654 = sbr.rel (%p1652) target = $region156
      $region155: #{tpu_custom_call.1} parent=5 // pred_region
        %s1655 = ssub.s32 %s27, 2
        // Predicated region
        $region157: #{tpu_custom_call.1} parent=155 // pred_check
          %p1656 = pneg %p302
        $region158: #{tpu_custom_call.1} parent=155 // pred_check_branch
          %1658 = sbr.rel (%p1656) target = $region160
        $region159: #{tpu_custom_call.1} parent=155 // pred_region
          %s1659 = sand.u32 %s287, 1
          %s1660 = scalar_lea.sflag [#allocation6], %s1659
          %s1661 = sand.u32 %s287, 1
          %s1662 = scalar_lea.vmem [#allocation5], %s1661
          %1664 = dma.done %s1660, 16
        $region160: #{tpu_custom_call.1} parent=155 // pred_fallthru
          _
        // Predicated region
        $region161: #{tpu_custom_call.1} parent=155 // pred_check
          %p1665 = pneg %p328
        $region162: #{tpu_custom_call.1} parent=155 // pred_check_branch
          %1667 = sbr.rel (%p1665) target = $region164
        $region163: #{tpu_custom_call.1} parent=155 // pred_region
          %s1668 = sand.u32 %s33, 1
          %s1669 = scalar_lea.sflag [#allocation8], %s1668
          %s1670 = sand.u32 %s313, 1
          %s1671 = smul.addr %s1670, 64
          %s1672 = scalar_lea.vmem [#allocation7], %s1671
          %1674 = dma.done %s1669, 1024
        $region164: #{tpu_custom_call.1} parent=155 // pred_fallthru
          _
        // Predicated region
        $region165: #{tpu_custom_call.1} parent=155 // pred_check
          %p1675 = pneg %p354
        $region166: #{tpu_custom_call.1} parent=155 // pred_check_branch
          %1677 = sbr.rel (%p1675) target = $region168
        $region167: #{tpu_custom_call.1} parent=155 // pred_region
          %s1678 = sand.u32 %s33, 1
          %s1679 = scalar_lea.sflag [#allocation8], %s1678
          %s1680 = sand.u32 %s339, 1
          %s1681 = smul.addr %s1680, 64
          %s1682 = scalar_lea.vmem [#allocation9], %s1681
          %1684 = dma.done %s1679, 1024
        $region168: #{tpu_custom_call.1} parent=155 // pred_fallthru
          _
      $region156: #{tpu_custom_call.1} parent=5 // pred_fallthru
        _
    $region6: #{tpu_custom_call.1} parent=1 // loop_footer
      %s31 = sadd.s32 1, %s27
    $region7: #{tpu_custom_call.1} parent=1 // loop_footer_branch
      %26 = sbr.rel target = $region3
    $region8: #{tpu_custom_call.1} parent=1 // loop_exit
      _
    %1685 = vsyncpa [#allocation6], 1
    %s1686 = scalar_lea.sflag [#allocation6], 1
    %1687 = vsyncpa %s1686, 1
    %1688 = vsyncpa [#allocation8], 1
    %s1689 = scalar_lea.sflag [#allocation8], 1
    %1690 = vsyncpa %s1689, 1

</llo_original>
